<compile_context>
chip_gen: v6e
topology: v6e:2x2x1
jax: 0.10.0
libtpu: 0.0.40
codegen_flags: <defaults>
</compile_context>

<pallas_src>
import jax
import jax.numpy as jnp
from jax.experimental import pallas as pl
from jax.experimental.pallas import tpu as pltpu

EPS = 1e-5


# ----------------------------------------------------------------------------
# Pallas kernel
# ----------------------------------------------------------------------------
def respair_distance_kernel(x_ref, w1_ref, wres_ref, w5_ref, w6_ref, bnp_ref,
                            o_ref):
    n = x_ref.shape[0]
    inv_n = jnp.float32(1.0 / n)
    # Hoisted once, reused by every BN-stat matmul (MXU does the axis-0 sums).
    ones_row = jnp.ones((1, n), jnp.float32)

    def bn_fold(z, gamma, beta):
        # Training-mode BatchNorm folded into a single scale/shift.
        mean = jnp.dot(ones_row, z, preferred_element_type=jnp.float32) * inv_n
        ex2 = jnp.dot(ones_row, z * z,
                      preferred_element_type=jnp.float32) * inv_n
        var = jnp.maximum(ex2 - mean * mean, 0.0)
        scale = gamma * jax.lax.rsqrt(var + EPS)
        shift = beta - mean * scale
        return z * scale + shift

    x = x_ref[...].astype(jnp.float32)

    # fc1 (bias cancelled by BN) -> bn1 -> relu
    z = jnp.dot(x, w1_ref[...], preferred_element_type=jnp.float32)
    h = jnp.maximum(bn_fold(z, bnp_ref[0:1, :], bnp_ref[1:2, :]), 0.0)

    # three ResLinear blocks: relu(bn(fc(h)) + h)   (fc bias cancelled by BN)
    for i in range(3):
        z = jnp.dot(h, wres_ref[i], preferred_element_type=jnp.float32)
        g = bnp_ref[2 + 2 * i:3 + 2 * i, :]
        b = bnp_ref[3 + 2 * i:4 + 2 * i, :]
        h = jnp.maximum(bn_fold(z, g, b) + h, 0.0)

    # fc5 (bias cancelled by BN) -> bn5 -> relu
    z5 = jnp.dot(h, w5_ref[...], preferred_element_type=jnp.float32)
    h5 = jnp.maximum(bn_fold(z5, bnp_ref[8:9, :32], bnp_ref[9:10, :32]), 0.0)

    # fc6 (+ bias) -> relu ; write a lane-dense (N,128) slab (col 0 is real).
    out = jnp.dot(h5, w6_ref[...],
                  preferred_element_type=jnp.float32) + bnp_ref[10:11, :128]
    o_ref[...] = jnp.maximum(out, 0.0)


def respair_distance(x, kernel_params):
    n = x.shape[0]
    vmem = pl.BlockSpec(memory_space=pltpu.MemorySpace.VMEM)
    out_slab = pl.pallas_call(
        respair_distance_kernel,
        out_shape=jax.ShapeDtypeStruct((n, 128), jnp.float32),
        in_specs=[vmem] * (1 + len(kernel_params)),
        out_specs=vmem,
    )(x, *kernel_params)
    return out_slab[:, :1]


# ----------------------------------------------------------------------------
# Parameter construction & packing
# ----------------------------------------------------------------------------
def init_params(dim, key):
    """Deterministic synthetic params.  Linear weights stored as (in, out)."""
    keys = jax.random.split(key, 16)
    ki = iter(range(16))

    def linear(in_f, out_f):
        kw, kb = jax.random.split(keys[next(ki)])
        w = jax.random.normal(kw, (in_f, out_f), jnp.float32) / jnp.sqrt(
            jnp.float32(in_f))
        b = jax.random.normal(kb, (1, out_f), jnp.float32) * 0.01
        return w, b

    def bn(feat):
        # PyTorch BatchNorm1d default init: weight=1, bias=0.
        return jnp.ones((1, feat), jnp.float32), jnp.zeros((1, feat),
                                                           jnp.float32)

    params = []
    w1, b1 = linear(dim, 256); g1, be1 = bn(256)
    params += [w1, b1, g1, be1]
    for _ in range(3):  # fc2, fc3, fc4 (ResLinear)
        w, b = linear(256, 256); g, be = bn(256)
        params += [w, b, g, be]
    w5, b5 = linear(256, 32); g5, be5 = bn(32)
    params += [w5, b5, g5, be5]
    w6, b6 = linear(32, 1)
    params += [w6, b6]
    return params


def pack_kernel_params(params):
    """Pack the 22 module params into 5 kernel operands (biases b1..b5 drop)."""
    (w1, b1, g1, be1,
     w2, b2, g2, be2,
     w3, b3, g3, be3,
     w4, b4, g4, be4,
     w5, b5, g5, be5,
     w6, b6) = params

    wres = jnp.stack([w2, w3, w4], axis=0)                       # (3,256,256)
    w6p = jnp.zeros((32, 128), jnp.float32).at[:, :1].set(w6)    # lane-dense

    def pad256(v):
        return jnp.zeros((1, 256), jnp.float32).at[:, :v.shape[1]].set(v)

    bnp = jnp.concatenate(
        [g1, be1, g2, be2, g3, be3, g4, be4,
         pad256(g5), pad256(be5),
         jnp.full((1, 256), b6[0, 0], jnp.float32)],              # fc6 bias
        axis=0)                                                   # (11,256)

    return (w1, wres, w5, w6p, bnp)


# ----------------------------------------------------------------------------
# Pure-JAX reference (full PyTorch train-mode semantics, biases included)
# ----------------------------------------------------------------------------
def _bn_train_ref(z, gamma, beta):
    mean = jnp.mean(z, axis=0, keepdims=True)
    var = jnp.mean(jnp.square(z - mean), axis=0, keepdims=True)
    return gamma * (z - mean) * jax.lax.rsqrt(var + EPS) + beta


def reference_forward(x, params):
    (w1, b1, g1, be1,
     w2, b2, g2, be2,
     w3, b3, g3, be3,
     w4, b4, g4, be4,
     w5, b5, g5, be5,
     w6, b6) = params
    h = jnp.maximum(_bn_train_ref(x @ w1 + b1, g1, be1), 0.0)
    for w, b, g, be in ((w2, b2, g2, be2), (w3, b3, g3, be3),
                        (w4, b4, g4, be4)):
        h = jnp.maximum(_bn_train_ref(h @ w + b, g, be) + h, 0.0)
    h5 = jnp.maximum(_bn_train_ref(h @ w5 + b5, g5, be5), 0.0)
    return jnp.maximum(h5 @ w6 + b6, 0.0)


# ----------------------------------------------------------------------------
if __name__ == "__main__":
    key = jax.random.PRNGKey(0)
    k_x, k_p = jax.random.split(key)

    batch, dim = 64, 32
    x = jax.random.normal(k_x, (batch, dim), jnp.float32)
    params = init_params(dim, k_p)
    kparams = pack_kernel_params(params)

    out = jax.block_until_ready(respair_distance(x, kparams))
    ref = reference_forward(x, params)

    assert out.shape == (batch, 1), out.shape
    assert jnp.all(jnp.isfinite(out))
    assert jnp.allclose(out, ref, atol=1e-4, rtol=1e-4), float(
        jnp.max(jnp.abs(out - ref)))
    print("KERNEL_OK")
</pallas_src>

<mosaic_0001>
module attributes {stable_mosaic.version = 11 : i64} {
  func.func @respair_distance_kernel(%arg0: memref<64x32xf32, #tpu.memory_space<vmem>>, %arg1: memref<32x256xf32, #tpu.memory_space<vmem>>, %arg2: memref<3x256x256xf32, #tpu.memory_space<vmem>>, %arg3: memref<256x32xf32, #tpu.memory_space<vmem>>, %arg4: memref<32x128xf32, #tpu.memory_space<vmem>>, %arg5: memref<11x256xf32, #tpu.memory_space<vmem>>, %arg6: memref<64x128xf32, #tpu.memory_space<vmem>>) attributes {dimension_semantics = [], scalar_prefetch = 0 : i64, scratch_operands = 0 : i64, tpu.core_type = #tpu.core_type<tc>} {
    %cst = arith.constant 1.000000e+00 : f32
    %0 = vector.broadcast %cst : f32 to vector<1x64xf32>
    %c0 = arith.constant 0 : index
    %c0_0 = arith.constant 0 : index
    %1 = vector.load %arg0[%c0, %c0_0] : memref<64x32xf32, #tpu.memory_space<vmem>>, vector<64x32xf32>
    %c0_1 = arith.constant 0 : index
    %c0_2 = arith.constant 0 : index
    %2 = vector.load %arg1[%c0_1, %c0_2] : memref<32x256xf32, #tpu.memory_space<vmem>>, vector<32x256xf32>
    %cst_3 = arith.constant dense<0.000000e+00> : vector<64x256xf32>
    %3 = tpu.matmul %1, %2, %cst_3 {dimension_numbers = #tpu.dot_dimension_numbers<[1], [0], [0], [1], [0, 0, 1, 1], [], []>} : vector<64x32xf32>, vector<32x256xf32>, vector<64x256xf32> -> vector<64x256xf32>
    %c0_4 = arith.constant 0 : index
    %c0_5 = arith.constant 0 : index
    %4 = vector.load %arg5[%c0_4, %c0_5] : memref<11x256xf32, #tpu.memory_space<vmem>>, vector<1x256xf32>
    %c1 = arith.constant 1 : index
    %c0_6 = arith.constant 0 : index
    %5 = vector.load %arg5[%c1, %c0_6] : memref<11x256xf32, #tpu.memory_space<vmem>>, vector<1x256xf32>
    %cst_7 = arith.constant dense<0.000000e+00> : vector<1x256xf32>
    %6 = tpu.matmul %0, %3, %cst_7 {dimension_numbers = #tpu.dot_dimension_numbers<[1], [0], [0], [1], [0, 0, 1, 1], [], []>} : vector<1x64xf32>, vector<64x256xf32>, vector<1x256xf32> -> vector<1x256xf32>
    %cst_8 = arith.constant 1.562500e-02 : f32
    %7 = vector.broadcast %cst_8 : f32 to vector<1x256xf32>
    %8 = arith.mulf %6, %7 : vector<1x256xf32>
    %9 = arith.mulf %3, %3 : vector<64x256xf32>
    %cst_9 = arith.constant dense<0.000000e+00> : vector<1x256xf32>
    %10 = tpu.matmul %0, %9, %cst_9 {dimension_numbers = #tpu.dot_dimension_numbers<[1], [0], [0], [1], [0, 0, 1, 1], [], []>} : vector<1x64xf32>, vector<64x256xf32>, vector<1x256xf32> -> vector<1x256xf32>
    %cst_10 = arith.constant 1.562500e-02 : f32
    %11 = vector.broadcast %cst_10 : f32 to vector<1x256xf32>
    %12 = arith.mulf %10, %11 : vector<1x256xf32>
    %13 = arith.mulf %8, %8 : vector<1x256xf32>
    %14 = arith.subf %12, %13 : vector<1x256xf32>
    %cst_11 = arith.constant 0.000000e+00 : f32
    %15 = vector.broadcast %cst_11 : f32 to vector<1x256xf32>
    %16 = arith.maximumf %14, %15 : vector<1x256xf32>
    %cst_12 = arith.constant 9.99999974E-6 : f32
    %17 = vector.broadcast %cst_12 : f32 to vector<1x256xf32>
    %18 = arith.addf %16, %17 : vector<1x256xf32>
    %19 = math.rsqrt %18 : vector<1x256xf32>
    %20 = arith.mulf %4, %19 : vector<1x256xf32>
    %21 = arith.mulf %8, %20 : vector<1x256xf32>
    %22 = arith.subf %5, %21 : vector<1x256xf32>
    %23 = vector.broadcast %20 : vector<1x256xf32> to vector<64x256xf32>
    %24 = arith.mulf %3, %23 : vector<64x256xf32>
    %25 = vector.broadcast %22 : vector<1x256xf32> to vector<64x256xf32>
    %26 = arith.addf %24, %25 : vector<64x256xf32>
    %cst_13 = arith.constant 0.000000e+00 : f32
    %27 = vector.broadcast %cst_13 : f32 to vector<64x256xf32>
    %28 = arith.maximumf %26, %27 : vector<64x256xf32>
    %c0_14 = arith.constant 0 : index
    %c0_15 = arith.constant 0 : index
    %c0_16 = arith.constant 0 : index
    %29 = vector.load %arg2[%c0_14, %c0_15, %c0_16] : memref<3x256x256xf32, #tpu.memory_space<vmem>>, vector<1x256x256xf32>
    %30 = vector.shape_cast %29 : vector<1x256x256xf32> to vector<256x256xf32>
    %cst_17 = arith.constant dense<0.000000e+00> : vector<64x256xf32>
    %31 = tpu.matmul %28, %30, %cst_17 {dimension_numbers = #tpu.dot_dimension_numbers<[1], [0], [0], [1], [0, 0, 1, 1], [], []>} : vector<64x256xf32>, vector<256x256xf32>, vector<64x256xf32> -> vector<64x256xf32>
    %c2 = arith.constant 2 : index
    %c0_18 = arith.constant 0 : index
    %32 = vector.load %arg5[%c2, %c0_18] : memref<11x256xf32, #tpu.memory_space<vmem>>, vector<1x256xf32>
    %c3 = arith.constant 3 : index
    %c0_19 = arith.constant 0 : index
    %33 = vector.load %arg5[%c3, %c0_19] : memref<11x256xf32, #tpu.memory_space<vmem>>, vector<1x256xf32>
    %cst_20 = arith.constant dense<0.000000e+00> : vector<1x256xf32>
    %34 = tpu.matmul %0, %31, %cst_20 {dimension_numbers = #tpu.dot_dimension_numbers<[1], [0], [0], [1], [0, 0, 1, 1], [], []>} : vector<1x64xf32>, vector<64x256xf32>, vector<1x256xf32> -> vector<1x256xf32>
    %cst_21 = arith.constant 1.562500e-02 : f32
    %35 = vector.broadcast %cst_21 : f32 to vector<1x256xf32>
    %36 = arith.mulf %34, %35 : vector<1x256xf32>
    %37 = arith.mulf %31, %31 : vector<64x256xf32>
    %cst_22 = arith.constant dense<0.000000e+00> : vector<1x256xf32>
    %38 = tpu.matmul %0, %37, %cst_22 {dimension_numbers = #tpu.dot_dimension_numbers<[1], [0], [0], [1], [0, 0, 1, 1], [], []>} : vector<1x64xf32>, vector<64x256xf32>, vector<1x256xf32> -> vector<1x256xf32>
    %cst_23 = arith.constant 1.562500e-02 : f32
    %39 = vector.broadcast %cst_23 : f32 to vector<1x256xf32>
    %40 = arith.mulf %38, %39 : vector<1x256xf32>
    %41 = arith.mulf %36, %36 : vector<1x256xf32>
    %42 = arith.subf %40, %41 : vector<1x256xf32>
    %cst_24 = arith.constant 0.000000e+00 : f32
    %43 = vector.broadcast %cst_24 : f32 to vector<1x256xf32>
    %44 = arith.maximumf %42, %43 : vector<1x256xf32>
    %cst_25 = arith.constant 9.99999974E-6 : f32
    %45 = vector.broadcast %cst_25 : f32 to vector<1x256xf32>
    %46 = arith.addf %44, %45 : vector<1x256xf32>
    %47 = math.rsqrt %46 : vector<1x256xf32>
    %48 = arith.mulf %32, %47 : vector<1x256xf32>
    %49 = arith.mulf %36, %48 : vector<1x256xf32>
    %50 = arith.subf %33, %49 : vector<1x256xf32>
    %51 = vector.broadcast %48 : vector<1x256xf32> to vector<64x256xf32>
    %52 = arith.mulf %31, %51 : vector<64x256xf32>
    %53 = vector.broadcast %50 : vector<1x256xf32> to vector<64x256xf32>
    %54 = arith.addf %52, %53 : vector<64x256xf32>
    %55 = arith.addf %54, %28 : vector<64x256xf32>
    %cst_26 = arith.constant 0.000000e+00 : f32
    %56 = vector.broadcast %cst_26 : f32 to vector<64x256xf32>
    %57 = arith.maximumf %55, %56 : vector<64x256xf32>
    %c1_27 = arith.constant 1 : index
    %c0_28 = arith.constant 0 : index
    %c0_29 = arith.constant 0 : index
    %58 = vector.load %arg2[%c1_27, %c0_28, %c0_29] : memref<3x256x256xf32, #tpu.memory_space<vmem>>, vector<1x256x256xf32>
    %59 = vector.shape_cast %58 : vector<1x256x256xf32> to vector<256x256xf32>
    %cst_30 = arith.constant dense<0.000000e+00> : vector<64x256xf32>
    %60 = tpu.matmul %57, %59, %cst_30 {dimension_numbers = #tpu.dot_dimension_numbers<[1], [0], [0], [1], [0, 0, 1, 1], [], []>} : vector<64x256xf32>, vector<256x256xf32>, vector<64x256xf32> -> vector<64x256xf32>
    %c4 = arith.constant 4 : index
    %c0_31 = arith.constant 0 : index
    %61 = vector.load %arg5[%c4, %c0_31] : memref<11x256xf32, #tpu.memory_space<vmem>>, vector<1x256xf32>
    %c5 = arith.constant 5 : index
    %c0_32 = arith.constant 0 : index
    %62 = vector.load %arg5[%c5, %c0_32] : memref<11x256xf32, #tpu.memory_space<vmem>>, vector<1x256xf32>
    %cst_33 = arith.constant dense<0.000000e+00> : vector<1x256xf32>
    %63 = tpu.matmul %0, %60, %cst_33 {dimension_numbers = #tpu.dot_dimension_numbers<[1], [0], [0], [1], [0, 0, 1, 1], [], []>} : vector<1x64xf32>, vector<64x256xf32>, vector<1x256xf32> -> vector<1x256xf32>
    %cst_34 = arith.constant 1.562500e-02 : f32
    %64 = vector.broadcast %cst_34 : f32 to vector<1x256xf32>
    %65 = arith.mulf %63, %64 : vector<1x256xf32>
    %66 = arith.mulf %60, %60 : vector<64x256xf32>
    %cst_35 = arith.constant dense<0.000000e+00> : vector<1x256xf32>
    %67 = tpu.matmul %0, %66, %cst_35 {dimension_numbers = #tpu.dot_dimension_numbers<[1], [0], [0], [1], [0, 0, 1, 1], [], []>} : vector<1x64xf32>, vector<64x256xf32>, vector<1x256xf32> -> vector<1x256xf32>
    %cst_36 = arith.constant 1.562500e-02 : f32
    %68 = vector.broadcast %cst_36 : f32 to vector<1x256xf32>
    %69 = arith.mulf %67, %68 : vector<1x256xf32>
    %70 = arith.mulf %65, %65 : vector<1x256xf32>
    %71 = arith.subf %69, %70 : vector<1x256xf32>
    %cst_37 = arith.constant 0.000000e+00 : f32
    %72 = vector.broadcast %cst_37 : f32 to vector<1x256xf32>
    %73 = arith.maximumf %71, %72 : vector<1x256xf32>
    %cst_38 = arith.constant 9.99999974E-6 : f32
    %74 = vector.broadcast %cst_38 : f32 to vector<1x256xf32>
    %75 = arith.addf %73, %74 : vector<1x256xf32>
    %76 = math.rsqrt %75 : vector<1x256xf32>
    %77 = arith.mulf %61, %76 : vector<1x256xf32>
    %78 = arith.mulf %65, %77 : vector<1x256xf32>
    %79 = arith.subf %62, %78 : vector<1x256xf32>
    %80 = vector.broadcast %77 : vector<1x256xf32> to vector<64x256xf32>
    %81 = arith.mulf %60, %80 : vector<64x256xf32>
    %82 = vector.broadcast %79 : vector<1x256xf32> to vector<64x256xf32>
    %83 = arith.addf %81, %82 : vector<64x256xf32>
    %84 = arith.addf %83, %57 : vector<64x256xf32>
    %cst_39 = arith.constant 0.000000e+00 : f32
    %85 = vector.broadcast %cst_39 : f32 to vector<64x256xf32>
    %86 = arith.maximumf %84, %85 : vector<64x256xf32>
    %c2_40 = arith.constant 2 : index
    %c0_41 = arith.constant 0 : index
    %c0_42 = arith.constant 0 : index
    %87 = vector.load %arg2[%c2_40, %c0_41, %c0_42] : memref<3x256x256xf32, #tpu.memory_space<vmem>>, vector<1x256x256xf32>
    %88 = vector.shape_cast %87 : vector<1x256x256xf32> to vector<256x256xf32>
    %cst_43 = arith.constant dense<0.000000e+00> : vector<64x256xf32>
    %89 = tpu.matmul %86, %88, %cst_43 {dimension_numbers = #tpu.dot_dimension_numbers<[1], [0], [0], [1], [0, 0, 1, 1], [], []>} : vector<64x256xf32>, vector<256x256xf32>, vector<64x256xf32> -> vector<64x256xf32>
    %c6 = arith.constant 6 : index
    %c0_44 = arith.constant 0 : index
    %90 = vector.load %arg5[%c6, %c0_44] : memref<11x256xf32, #tpu.memory_space<vmem>>, vector<1x256xf32>
    %c7 = arith.constant 7 : index
    %c0_45 = arith.constant 0 : index
    %91 = vector.load %arg5[%c7, %c0_45] : memref<11x256xf32, #tpu.memory_space<vmem>>, vector<1x256xf32>
    %cst_46 = arith.constant dense<0.000000e+00> : vector<1x256xf32>
    %92 = tpu.matmul %0, %89, %cst_46 {dimension_numbers = #tpu.dot_dimension_numbers<[1], [0], [0], [1], [0, 0, 1, 1], [], []>} : vector<1x64xf32>, vector<64x256xf32>, vector<1x256xf32> -> vector<1x256xf32>
    %cst_47 = arith.constant 1.562500e-02 : f32
    %93 = vector.broadcast %cst_47 : f32 to vector<1x256xf32>
    %94 = arith.mulf %92, %93 : vector<1x256xf32>
    %95 = arith.mulf %89, %89 : vector<64x256xf32>
    %cst_48 = arith.constant dense<0.000000e+00> : vector<1x256xf32>
    %96 = tpu.matmul %0, %95, %cst_48 {dimension_numbers = #tpu.dot_dimension_numbers<[1], [0], [0], [1], [0, 0, 1, 1], [], []>} : vector<1x64xf32>, vector<64x256xf32>, vector<1x256xf32> -> vector<1x256xf32>
    %cst_49 = arith.constant 1.562500e-02 : f32
    %97 = vector.broadcast %cst_49 : f32 to vector<1x256xf32>
    %98 = arith.mulf %96, %97 : vector<1x256xf32>
    %99 = arith.mulf %94, %94 : vector<1x256xf32>
    %100 = arith.subf %98, %99 : vector<1x256xf32>
    %cst_50 = arith.constant 0.000000e+00 : f32
    %101 = vector.broadcast %cst_50 : f32 to vector<1x256xf32>
    %102 = arith.maximumf %100, %101 : vector<1x256xf32>
    %cst_51 = arith.constant 9.99999974E-6 : f32
    %103 = vector.broadcast %cst_51 : f32 to vector<1x256xf32>
    %104 = arith.addf %102, %103 : vector<1x256xf32>
    %105 = math.rsqrt %104 : vector<1x256xf32>
    %106 = arith.mulf %90, %105 : vector<1x256xf32>
    %107 = arith.mulf %94, %106 : vector<1x256xf32>
    %108 = arith.subf %91, %107 : vector<1x256xf32>
    %109 = vector.broadcast %106 : vector<1x256xf32> to vector<64x256xf32>
    %110 = arith.mulf %89, %109 : vector<64x256xf32>
    %111 = vector.broadcast %108 : vector<1x256xf32> to vector<64x256xf32>
    %112 = arith.addf %110, %111 : vector<64x256xf32>
    %113 = arith.addf %112, %86 : vector<64x256xf32>
    %cst_52 = arith.constant 0.000000e+00 : f32
    %114 = vector.broadcast %cst_52 : f32 to vector<64x256xf32>
    %115 = arith.maximumf %113, %114 : vector<64x256xf32>
    %c0_53 = arith.constant 0 : index
    %c0_54 = arith.constant 0 : index
    %116 = vector.load %arg3[%c0_53, %c0_54] : memref<256x32xf32, #tpu.memory_space<vmem>>, vector<256x32xf32>
    %cst_55 = arith.constant dense<0.000000e+00> : vector<64x32xf32>
    %117 = tpu.matmul %115, %116, %cst_55 {dimension_numbers = #tpu.dot_dimension_numbers<[1], [0], [0], [1], [0, 0, 1, 1], [], []>} : vector<64x256xf32>, vector<256x32xf32>, vector<64x32xf32> -> vector<64x32xf32>
    %c8 = arith.constant 8 : index
    %c0_56 = arith.constant 0 : index
    %118 = vector.load %arg5[%c8, %c0_56] : memref<11x256xf32, #tpu.memory_space<vmem>>, vector<1x32xf32>
    %c9 = arith.constant 9 : index
    %c0_57 = arith.constant 0 : index
    %119 = vector.load %arg5[%c9, %c0_57] : memref<11x256xf32, #tpu.memory_space<vmem>>, vector<1x32xf32>
    %cst_58 = arith.constant dense<0.000000e+00> : vector<1x32xf32>
    %120 = tpu.matmul %0, %117, %cst_58 {dimension_numbers = #tpu.dot_dimension_numbers<[1], [0], [0], [1], [0, 0, 1, 1], [], []>} : vector<1x64xf32>, vector<64x32xf32>, vector<1x32xf32> -> vector<1x32xf32>
    %cst_59 = arith.constant 1.562500e-02 : f32
    %121 = vector.broadcast %cst_59 : f32 to vector<1x32xf32>
    %122 = arith.mulf %120, %121 : vector<1x32xf32>
    %123 = arith.mulf %117, %117 : vector<64x32xf32>
    %cst_60 = arith.constant dense<0.000000e+00> : vector<1x32xf32>
    %124 = tpu.matmul %0, %123, %cst_60 {dimension_numbers = #tpu.dot_dimension_numbers<[1], [0], [0], [1], [0, 0, 1, 1], [], []>} : vector<1x64xf32>, vector<64x32xf32>, vector<1x32xf32> -> vector<1x32xf32>
    %cst_61 = arith.constant 1.562500e-02 : f32
    %125 = vector.broadcast %cst_61 : f32 to vector<1x32xf32>
    %126 = arith.mulf %124, %125 : vector<1x32xf32>
    %127 = arith.mulf %122, %122 : vector<1x32xf32>
    %128 = arith.subf %126, %127 : vector<1x32xf32>
    %cst_62 = arith.constant 0.000000e+00 : f32
    %129 = vector.broadcast %cst_62 : f32 to vector<1x32xf32>
    %130 = arith.maximumf %128, %129 : vector<1x32xf32>
    %cst_63 = arith.constant 9.99999974E-6 : f32
    %131 = vector.broadcast %cst_63 : f32 to vector<1x32xf32>
    %132 = arith.addf %130, %131 : vector<1x32xf32>
    %133 = math.rsqrt %132 : vector<1x32xf32>
    %134 = arith.mulf %118, %133 : vector<1x32xf32>
    %135 = arith.mulf %122, %134 : vector<1x32xf32>
    %136 = arith.subf %119, %135 : vector<1x32xf32>
    %137 = vector.broadcast %134 : vector<1x32xf32> to vector<64x32xf32>
    %138 = arith.mulf %117, %137 : vector<64x32xf32>
    %139 = vector.broadcast %136 : vector<1x32xf32> to vector<64x32xf32>
    %140 = arith.addf %138, %139 : vector<64x32xf32>
    %cst_64 = arith.constant 0.000000e+00 : f32
    %141 = vector.broadcast %cst_64 : f32 to vector<64x32xf32>
    %142 = arith.maximumf %140, %141 : vector<64x32xf32>
    %c0_65 = arith.constant 0 : index
    %c0_66 = arith.constant 0 : index
    %143 = vector.load %arg4[%c0_65, %c0_66] : memref<32x128xf32, #tpu.memory_space<vmem>>, vector<32x128xf32>
    %cst_67 = arith.constant dense<0.000000e+00> : vector<64x128xf32>
    %144 = tpu.matmul %142, %143, %cst_67 {dimension_numbers = #tpu.dot_dimension_numbers<[1], [0], [0], [1], [0, 0, 1, 1], [], []>} : vector<64x32xf32>, vector<32x128xf32>, vector<64x128xf32> -> vector<64x128xf32>
    %c10 = arith.constant 10 : index
    %c0_68 = arith.constant 0 : index
    %145 = vector.load %arg5[%c10, %c0_68] : memref<11x256xf32, #tpu.memory_space<vmem>>, vector<1x128xf32>
    %146 = vector.broadcast %145 : vector<1x128xf32> to vector<64x128xf32>
    %147 = arith.addf %144, %146 : vector<64x128xf32>
    %cst_69 = arith.constant 0.000000e+00 : f32
    %148 = vector.broadcast %cst_69 : f32 to vector<64x128xf32>
    %149 = arith.maximumf %147, %148 : vector<64x128xf32>
    %c0_70 = arith.constant 0 : index
    %c0_71 = arith.constant 0 : index
    %150 = vector.load %arg6[%c0_70, %c0_71] : memref<64x128xf32, #tpu.memory_space<vmem>>, vector<64x128xf32>
    tpu.vector_store %arg6[%c0_70, %c0_71], %149 {strides = array<i32>} : memref<64x128xf32, #tpu.memory_space<vmem>>, vector<64x128xf32>,
    return
  }
}

</mosaic_0001>

<llo_original>
// kernel: tpu_custom_call.1
$region0: #{tpu_custom_call.1}
  #allocation0 [shape = 'u32[]', space=smem, size = 0x4, offset = 0x4, fixed_abs, tag = 'smem constant byte address 0x4 - core index']
  #allocation1 [shape = 'u32[144,128]{1,0:T(1,128)}', space=vmem, size = 0x12000, scoped, tag = 'internal scratch']
  %s0 = inlined_call_operand.vmem [shape: f32[64,32], index: 0, kind: input, shape index: {}]
  %s1 = inlined_call_operand.vmem [shape: f32[32,256], index: 1, kind: input, shape index: {}]
  %s2 = inlined_call_operand.hbm [shape: f32[3,256,256], index: 2, kind: input, shape index: {}]
  %s3 = inlined_call_operand.vmem [shape: f32[256,32], index: 3, kind: input, shape index: {}]
  %s4 = inlined_call_operand.vmem [shape: f32[32,128], index: 4, kind: input, shape index: {}]
  %s5 = inlined_call_operand.vmem [shape: f32[11,256], index: 5, kind: input, shape index: {}]
  %s6 = inlined_call_operand.hbm [shape: f32[64,128], index: 6, kind: output, shape index: {}]
  %s7 = sld [smem:[#allocation0]]
  $region38: #{tpu_custom_call.1} parent=0
    _
  %s9 = ssub.s32 1, %s7
  %s10 = scalar_select 0, %s9, %s7
  $region1: #{tpu_custom_call.1} parent=0
    #allocation2 [shape = 'u8[786432]{0}', space=vmem, size = 0xc0000, scoped, tag = 'input window, operand 2, single buffered']
    #allocation3 [shape = 's32[1]{0}', space=sflag, size = 0x4, scoped, tag = 'scoped memory for tpu_custom_call.1']
    #allocation4 [shape = 's32[1]{0}', space=sflag, size = 0x4, scoped, tag = 'scoped memory for tpu_custom_call.1']
    #allocation5 [shape = 'u8[32768]{0}', space=vmem, size = 0x8000, scoped, tag = 'output window, operand 0, single buffered']
    %11 = vsyncpa [#allocation3], 0
    %12 = vsyncpa [#allocation4], 0
    // Predicated region
    $region2: #{tpu_custom_call.1} parent=1 // pred_check
      _
    $region3: #{tpu_custom_call.1} parent=1 // pred_check_branch
      %14 = sbr.rel (0) target = $region5
    $region4: #{tpu_custom_call.1} parent=1 // pred_region
      _
    $region5: #{tpu_custom_call.1} parent=1 // pred_fallthru
      _
    // Predicated region
    $region6: #{tpu_custom_call.1} parent=1 // pred_check
      _
    $region7: #{tpu_custom_call.1} parent=1 // pred_check_branch
      %16 = sbr.rel (0) target = $region9
    $region8: #{tpu_custom_call.1} parent=1 // pred_region
      _
    $region9: #{tpu_custom_call.1} parent=1 // pred_fallthru
      _
    // Predicated region
    $region10: #{tpu_custom_call.1} parent=1 // pred_check
      _
    $region11: #{tpu_custom_call.1} parent=1 // pred_check_branch
      %18 = sbr.rel (0) target = $region13
    $region12: #{tpu_custom_call.1} parent=1 // pred_region
      %s20 = ssub.s32 24576, 24576
      %21 = vsyncadd [#allocation3], %s20
      %s22 = sshll.u32 [#allocation2], 4
      %s23 = int_to_ptr.vmem [resolvable:$true] %s22
      %28 = dma.hbm_to_vmem [thread:$0]  %s2, 24576, %s23, [#allocation3], 256, 256, 16
    $region13: #{tpu_custom_call.1} parent=1 // pred_fallthru
      _
    // Predicated region
    $region14: #{tpu_custom_call.1} parent=1 // pred_check
      _
    $region15: #{tpu_custom_call.1} parent=1 // pred_check_branch
      %30 = sbr.rel (0) target = $region17
    $region16: #{tpu_custom_call.1} parent=1 // pred_region
      _
    $region17: #{tpu_custom_call.1} parent=1 // pred_fallthru
      _
    // Predicated region
    $region18: #{tpu_custom_call.1} parent=1 // pred_check
      _
    $region19: #{tpu_custom_call.1} parent=1 // pred_check_branch
      %32 = sbr.rel (0) target = $region21
    $region20: #{tpu_custom_call.1} parent=1 // pred_region
      _
    $region21: #{tpu_custom_call.1} parent=1 // pred_fallthru
      _
    // Predicated region
    $region22: #{tpu_custom_call.1} parent=1 // pred_check
      _
    $region23: #{tpu_custom_call.1} parent=1 // pred_check_branch
      %34 = sbr.rel (0) target = $region25
    $region24: #{tpu_custom_call.1} parent=1 // pred_region
      _
    $region25: #{tpu_custom_call.1} parent=1 // pred_fallthru
      _
    // Predicated region
    $region26: #{tpu_custom_call.1} parent=1 // pred_check
      _
    $region27: #{tpu_custom_call.1} parent=1 // pred_check_branch
      %36 = sbr.rel (0) target = $region29
    $region28: #{tpu_custom_call.1} parent=1 // pred_region
      %37 = dma.done [#allocation3], 24576
    $region29: #{tpu_custom_call.1} parent=1 // pred_fallthru
      _
    %v38 = vld [vmem:[%s0] sm:$0xff]
    %v39 = vld [vmem:[%s0 + $0x8] sm:$0xff]
    %v40 = vld [vmem:[%s0 + $0x10] sm:$0xff]
    %v41 = vld [vmem:[%s0 + $0x18] sm:$0xff]
    %v42 = vld [vmem:[%s0 + $0x20] sm:$0xff]
    %v43 = vld [vmem:[%s0 + $0x28] sm:$0xff]
    %v44 = vld [vmem:[%s0 + $0x30] sm:$0xff]
    %v45 = vld [vmem:[%s0 + $0x38] sm:$0xff]
    %v46 = vld [vmem:[%s1] sm:$0xff]
    %v47 = vld [vmem:[%s1 + $0x8] sm:$0xff]
    %v48 = vld [vmem:[%s1 + $0x10] sm:$0xff]
    %v49 = vld [vmem:[%s1 + $0x18] sm:$0xff]
    %v50 = vld [vmem:[%s1 + $0x20] sm:$0xff]
    %v51 = vld [vmem:[%s1 + $0x28] sm:$0xff]
    %v52 = vld [vmem:[%s1 + $0x30] sm:$0xff]
    %v53 = vld [vmem:[%s1 + $0x38] sm:$0xff]
    %vm54 = vcmask 261120
    %v56 = vsel %vm54, %v38, 0
    %v59 = vsel %vm54, %v39, 0
    %v62 = vsel %vm54, %v40, 0
    %v65 = vsel %vm54, %v41, 0
    %v68 = vsel %vm54, %v42, 0
    %v71 = vsel %vm54, %v43, 0
    %v74 = vsel %vm54, %v44, 0
    %v77 = vsel %vm54, %v45, 0
    %79 = vmatprep.subr.mxu0 0.0
    %80 = vmatpush1.msra.mxu0 0.0
    %81 = vmatprep.subr.mxu0 0.0
    %82 = vmatpush1.msra.mxu0 0.0
    %83 = vmatprep.subr.mxu0 0.0
    %84 = vmatpush1.msra.mxu0 0.0
    %85 = vmatprep.subr.mxu0 0.0
    %86 = vmatpush1.msra.mxu0 0.0
    %87 = vmatprep.subr.mxu0 0.0
    %88 = vmatpush1.msra.mxu0 0.0
    %89 = vmatprep.subr.mxu0 0.0
    %90 = vmatpush1.msra.mxu0 0.0
    %91 = vmatprep.subr.mxu0 0.0
    %92 = vmatpush1.msra.mxu0 0.0
    %93 = vmatprep.subr.mxu0 0.0
    %94 = vmatpush1.msra.mxu0 0.0
    %95 = vmatprep.subr.mxu0 0.0
    %96 = vmatpush1.msra.mxu0 0.0
    %97 = vmatprep.subr.mxu0 0.0
    %98 = vmatpush1.msra.mxu0 0.0
    %99 = vmatprep.subr.mxu0 0.0
    %100 = vmatpush1.msra.mxu0 0.0
    %101 = vmatprep.subr.mxu0 0.0
    %102 = vmatpush1.msra.mxu0 0.0
    %103 = vmatprep.subr.mxu0 %v53
    %104 = vmatpush1.msra.mxu0 %v52
    %105 = vmatprep.subr.mxu0 %v51
    %106 = vmatpush1.msra.mxu0 %v50
    %107 = vmatprep.subr.mxu0 %v49
    %108 = vmatpush1.msra.mxu0 %v48
    %109 = vmatprep.subr.mxu0 %v47
    %110 = vmatpush1.msra.mxu0 %v46
    %111 = vmatprep.subr.mxu0 0.0
    %112 = vmatpush2.msra.mxu0 0.0
    %113 = vmatprep.subr.mxu0 0.0
    %114 = vmatpush2.msra.mxu0 0.0
    %115 = vmatprep.subr.mxu0 0.0
    %116 = vmatpush2.msra.mxu0 0.0
    %117 = vmatprep.subr.mxu0 0.0
    %118 = vmatpush2.msra.mxu0 0.0
    %119 = vmatprep.subr.mxu0 0.0
    %120 = vmatpush2.msra.mxu0 0.0
    %121 = vmatprep.subr.mxu0 0.0
    %122 = vmatpush2.msra.mxu0 0.0
    %123 = vmatprep.subr.mxu0 0.0
    %124 = vmatpush2.msra.mxu0 0.0
    %125 = vmatprep.subr.mxu0 0.0
    %126 = vmatpush2.msra.mxu0 0.0
    %127 = vmatprep.subr.mxu0 0.0
    %128 = vmatpush2.msra.mxu0 0.0
    %129 = vmatprep.subr.mxu0 0.0
    %130 = vmatpush2.msra.mxu0 0.0
    %131 = vmatprep.subr.mxu0 0.0
    %132 = vmatpush2.msra.mxu0 0.0
    %133 = vmatprep.subr.mxu0 0.0
    %134 = vmatpush2.msra.mxu0 0.0
    %135 = vmatprep.subr.mxu0 0.0
    %136 = vmatpush2.msra.mxu0 0.0
    %137 = vmatprep.subr.mxu0 0.0
    %138 = vmatpush2.msra.mxu0 0.0
    %139 = vmatprep.subr.mxu0 0.0
    %140 = vmatpush2.msra.mxu0 0.0
    %141 = vmatprep.subr.mxu0 0.0
    %142 = vmatpush2.msra.mxu0 0.0
    %143 = vmatprep.mubr.f32.mxu0 0.0
    %144 = vmatmul.mubr.f32.gmra.mxu0 %v56
    %v145 = vpop.f32.mrf.mxu0
    %v146 = vadd.f32 0.0, %v145
    %v147 = vpop.f32.mrf.mxu0
    %v148 = vadd.f32 0.0, %v147
    %149 = vmatprep.mubr.f32.mxu0 0.0
    %150 = vmatmul.mubr.f32.gmra.mxu0 %v59
    %v151 = vpop.f32.mrf.mxu0
    %v152 = vadd.f32 0.0, %v151
    %v153 = vpop.f32.mrf.mxu0
    %v154 = vadd.f32 0.0, %v153
    %155 = vmatprep.mubr.f32.mxu0 0.0
    %156 = vmatmul.mubr.f32.gmra.mxu0 %v62
    %v157 = vpop.f32.mrf.mxu0
    %v158 = vadd.f32 0.0, %v157
    %v159 = vpop.f32.mrf.mxu0
    %v160 = vadd.f32 0.0, %v159
    %161 = vmatprep.mubr.f32.mxu0 0.0
    %162 = vmatmul.mubr.f32.gmra.mxu0 %v65
    %v163 = vpop.f32.mrf.mxu0
    %v164 = vadd.f32 0.0, %v163
    %v165 = vpop.f32.mrf.mxu0
    %v166 = vadd.f32 0.0, %v165
    %167 = vmatprep.mubr.f32.mxu0 0.0
    %168 = vmatmul.mubr.f32.gmra.mxu0 %v68
    %v169 = vpop.f32.mrf.mxu0
    %v170 = vadd.f32 0.0, %v169
    %v171 = vpop.f32.mrf.mxu0
    %v172 = vadd.f32 0.0, %v171
    %173 = vmatprep.mubr.f32.mxu0 0.0
    %174 = vmatmul.mubr.f32.gmra.mxu0 %v71
    %v175 = vpop.f32.mrf.mxu0
    %v176 = vadd.f32 0.0, %v175
    %v177 = vpop.f32.mrf.mxu0
    %v178 = vadd.f32 0.0, %v177
    %179 = vmatprep.mubr.f32.mxu0 0.0
    %180 = vmatmul.mubr.f32.gmra.mxu0 %v74
    %v181 = vpop.f32.mrf.mxu0
    %v182 = vadd.f32 0.0, %v181
    %v183 = vpop.f32.mrf.mxu0
    %v184 = vadd.f32 0.0, %v183
    %185 = vmatprep.mubr.f32.mxu0 0.0
    %186 = vmatmul.mubr.f32.gmra.mxu0 %v77
    %v187 = vpop.f32.mrf.mxu0
    %v188 = vadd.f32 0.0, %v187
    %v189 = vpop.f32.mrf.mxu0
    %v190 = vadd.f32 0.0, %v189
    %191 = vdwg.mxu0
    %v192 = vld [vmem:[%s5] ss:$8 sm:$0x3]
    %s193 = scalar_lea.vmem %s5, 1
    %v194 = vld [vmem:[%s193] ss:$8 sm:$0x3]
    %vm195 = vcmask 523264
    %v197 = vsel %vm195, 1.0, 0
    %199 = vmatprep.subr.mxu0 0.0
    %200 = vmatpush1.msra.mxu0 0.0
    %201 = vmatprep.subr.mxu0 0.0
    %202 = vmatpush1.msra.mxu0 0.0
    %203 = vmatprep.subr.mxu0 0.0
    %204 = vmatpush1.msra.mxu0 0.0
    %205 = vmatprep.subr.mxu0 0.0
    %206 = vmatpush1.msra.mxu0 0.0
    %207 = vmatprep.subr.mxu0 0.0
    %208 = vmatpush1.msra.mxu0 0.0
    %209 = vmatprep.subr.mxu0 0.0
    %210 = vmatpush1.msra.mxu0 0.0
    %211 = vmatprep.subr.mxu0 0.0
    %212 = vmatpush1.msra.mxu0 0.0
    %213 = vmatprep.subr.mxu0 0.0
    %214 = vmatpush1.msra.mxu0 0.0
    %215 = vmatprep.subr.mxu0 %v190
    %216 = vmatpush1.msra.mxu0 %v188
    %217 = vmatprep.subr.mxu0 %v184
    %218 = vmatpush1.msra.mxu0 %v182
    %219 = vmatprep.subr.mxu0 %v178
    %220 = vmatpush1.msra.mxu0 %v176
    %221 = vmatprep.subr.mxu0 %v172
    %222 = vmatpush1.msra.mxu0 %v170
    %223 = vmatprep.subr.mxu0 %v166
    %224 = vmatpush1.msra.mxu0 %v164
    %225 = vmatprep.subr.mxu0 %v160
    %226 = vmatpush1.msra.mxu0 %v158
    %227 = vmatprep.subr.mxu0 %v154
    %228 = vmatpush1.msra.mxu0 %v152
    %229 = vmatprep.subr.mxu0 %v148
    %230 = vmatpush1.msra.mxu0 %v146
    %231 = vmatprep.subr.mxu0 0.0
    %232 = vmatpush2.msra.mxu0 0.0
    %233 = vmatprep.subr.mxu0 0.0
    %234 = vmatpush2.msra.mxu0 0.0
    %235 = vmatprep.subr.mxu0 0.0
    %236 = vmatpush2.msra.mxu0 0.0
    %237 = vmatprep.subr.mxu0 0.0
    %238 = vmatpush2.msra.mxu0 0.0
    %239 = vmatprep.subr.mxu0 0.0
    %240 = vmatpush2.msra.mxu0 0.0
    %241 = vmatprep.subr.mxu0 0.0
    %242 = vmatpush2.msra.mxu0 0.0
    %243 = vmatprep.subr.mxu0 0.0
    %244 = vmatpush2.msra.mxu0 0.0
    %245 = vmatprep.subr.mxu0 0.0
    %246 = vmatpush2.msra.mxu0 0.0
    %247 = vmatprep.subr.mxu0 0.0
    %248 = vmatpush2.msra.mxu0 0.0
    %249 = vmatprep.subr.mxu0 0.0
    %250 = vmatpush2.msra.mxu0 0.0
    %251 = vmatprep.subr.mxu0 0.0
    %252 = vmatpush2.msra.mxu0 0.0
    %253 = vmatprep.subr.mxu0 0.0
    %254 = vmatpush2.msra.mxu0 0.0
    %255 = vmatprep.subr.mxu0 0.0
    %256 = vmatpush2.msra.mxu0 0.0
    %257 = vmatprep.subr.mxu0 0.0
    %258 = vmatpush2.msra.mxu0 0.0
    %259 = vmatprep.subr.mxu0 0.0
    %260 = vmatpush2.msra.mxu0 0.0
    %261 = vmatprep.subr.mxu0 0.0
    %262 = vmatpush2.msra.mxu0 0.0
    %263 = vmatprep.mubr.f32.mxu0 0.0
    %264 = vmatmul.mubr.f32.gmra.mxu0 %v197
    %v265 = vpop.f32.mrf.mxu0
    %v266 = vadd.f32 0.0, %v265
    %v267 = vpop.f32.mrf.mxu0
    %v268 = vadd.f32 0.0, %v267
    %269 = vdwg.mxu0
    %v270 = vmul.f32 %v266, 0.015625
    %v271 = vmul.f32 %v268, 0.015625
    %v272 = vmul.f32 %v146, %v146
    %v273 = vmul.f32 %v148, %v148
    %v274 = vmul.f32 %v152, %v152
    %v275 = vmul.f32 %v154, %v154
    %v276 = vmul.f32 %v158, %v158
    %v277 = vmul.f32 %v160, %v160
    %v278 = vmul.f32 %v164, %v164
    %v279 = vmul.f32 %v166, %v166
    %v280 = vmul.f32 %v170, %v170
    %v281 = vmul.f32 %v172, %v172
    %v282 = vmul.f32 %v176, %v176
    %v283 = vmul.f32 %v178, %v178
    %v284 = vmul.f32 %v182, %v182
    %v285 = vmul.f32 %v184, %v184
    %v286 = vmul.f32 %v188, %v188
    %v287 = vmul.f32 %v190, %v190
    %288 = vmatprep.subr.mxu0 0.0
    %289 = vmatpush1.msra.mxu0 0.0
    %290 = vmatprep.subr.mxu0 0.0
    %291 = vmatpush1.msra.mxu0 0.0
    %292 = vmatprep.subr.mxu0 0.0
    %293 = vmatpush1.msra.mxu0 0.0
    %294 = vmatprep.subr.mxu0 0.0
    %295 = vmatpush1.msra.mxu0 0.0
    %296 = vmatprep.subr.mxu0 0.0
    %297 = vmatpush1.msra.mxu0 0.0
    %298 = vmatprep.subr.mxu0 0.0
    %299 = vmatpush1.msra.mxu0 0.0
    %300 = vmatprep.subr.mxu0 0.0
    %301 = vmatpush1.msra.mxu0 0.0
    %302 = vmatprep.subr.mxu0 0.0
    %303 = vmatpush1.msra.mxu0 0.0
    %304 = vmatprep.subr.mxu0 %v287
    %305 = vmatpush1.msra.mxu0 %v286
    %306 = vmatprep.subr.mxu0 %v285
    %307 = vmatpush1.msra.mxu0 %v284
    %308 = vmatprep.subr.mxu0 %v283
    %309 = vmatpush1.msra.mxu0 %v282
    %310 = vmatprep.subr.mxu0 %v281
    %311 = vmatpush1.msra.mxu0 %v280
    %312 = vmatprep.subr.mxu0 %v279
    %313 = vmatpush1.msra.mxu0 %v278
    %314 = vmatprep.subr.mxu0 %v277
    %315 = vmatpush1.msra.mxu0 %v276
    %316 = vmatprep.subr.mxu0 %v275
    %317 = vmatpush1.msra.mxu0 %v274
    %318 = vmatprep.subr.mxu0 %v273
    %319 = vmatpush1.msra.mxu0 %v272
    %320 = vmatprep.subr.mxu0 0.0
    %321 = vmatpush2.msra.mxu0 0.0
    %322 = vmatprep.subr.mxu0 0.0
    %323 = vmatpush2.msra.mxu0 0.0
    %324 = vmatprep.subr.mxu0 0.0
    %325 = vmatpush2.msra.mxu0 0.0
    %326 = vmatprep.subr.mxu0 0.0
    %327 = vmatpush2.msra.mxu0 0.0
    %328 = vmatprep.subr.mxu0 0.0
    %329 = vmatpush2.msra.mxu0 0.0
    %330 = vmatprep.subr.mxu0 0.0
    %331 = vmatpush2.msra.mxu0 0.0
    %332 = vmatprep.subr.mxu0 0.0
    %333 = vmatpush2.msra.mxu0 0.0
    %334 = vmatprep.subr.mxu0 0.0
    %335 = vmatpush2.msra.mxu0 0.0
    %336 = vmatprep.subr.mxu0 0.0
    %337 = vmatpush2.msra.mxu0 0.0
    %338 = vmatprep.subr.mxu0 0.0
    %339 = vmatpush2.msra.mxu0 0.0
    %340 = vmatprep.subr.mxu0 0.0
    %341 = vmatpush2.msra.mxu0 0.0
    %342 = vmatprep.subr.mxu0 0.0
    %343 = vmatpush2.msra.mxu0 0.0
    %344 = vmatprep.subr.mxu0 0.0
    %345 = vmatpush2.msra.mxu0 0.0
    %346 = vmatprep.subr.mxu0 0.0
    %347 = vmatpush2.msra.mxu0 0.0
    %348 = vmatprep.subr.mxu0 0.0
    %349 = vmatpush2.msra.mxu0 0.0
    %350 = vmatprep.subr.mxu0 0.0
    %351 = vmatpush2.msra.mxu0 0.0
    %352 = vmatprep.mubr.f32.mxu0 0.0
    %353 = vmatmul.mubr.f32.gmra.mxu0 %v197
    %v354 = vpop.f32.mrf.mxu0
    %v355 = vadd.f32 0.0, %v354
    %v356 = vpop.f32.mrf.mxu0
    %v357 = vadd.f32 0.0, %v356
    %358 = vdwg.mxu0
    %v359 = vmul.f32 %v355, 0.015625
    %v360 = vmul.f32 %v357, 0.015625
    %v361 = vmul.f32 %v270, %v270
    %v362 = vmul.f32 %v271, %v271
    %v363 = vsub.f32 %v359, %v361
    %v364 = vsub.f32 %v360, %v362
    %v365 = vmax.f32 %v363, 0.0
    %v366 = vmax.f32 %v364, 0.0
    %v367 = vadd.f32 %v365, 1e-05
    %v368 = vadd.f32 %v366, 1e-05
    %v369 = vrsqrt.pop %v367
    %v370 = vrsqrt.pop %v368
    %v373 = vcombine.low %v369, %v370
    %v375 = vunpack.c.l.s4 1966171168
    %v376 = vunpack.c.0.s8 %v375
    %v377 = vlaneseq
    %v378 = vshrl.u32 %v377, 7
    %v379 = vsub.s32 %v376, %v378
    %v380 = vrot.slane %v373, %v379
    %v382 = vunpack.c.l.s4 1966171168
    %v383 = vunpack.c.0.s8 %v382
    %v384 = vlaneseq
    %v385 = vshrl.u32 %v384, 7
    %v386 = vsub.s32 %v383, %v385
    %v387 = vrot.slane %v380, %v386
    %v389 = vmul.f32 %v192, %v387
    %v391 = vlaneseq
    %v392 = vshrl.u32 %v391, 7
    %v393 = vsub.s32 0, %v392
    %v394 = vrot.slane %v389, %v393
    %v395 = vlaneseq
    %v396 = vshrl.u32 %v395, 7
    %v397 = vsub.s32 1, %v396
    %v398 = vrot.slane %v389, %v397
    %v401 = vmul.f32 %v270, %v394
    %v402 = vmul.f32 %v271, %v398
    %v405 = vcombine.low %v401, %v402
    %v407 = vunpack.c.l.s4 1966171168
    %v408 = vunpack.c.0.s8 %v407
    %v409 = vlaneseq
    %v410 = vshrl.u32 %v409, 7
    %v411 = vsub.s32 %v408, %v410
    %v412 = vrot.slane %v405, %v411
    %v414 = vunpack.c.l.s4 1966171168
    %v415 = vunpack.c.0.s8 %v414
    %v416 = vlaneseq
    %v417 = vshrl.u32 %v416, 7
    %v418 = vsub.s32 %v415, %v417
    %v419 = vrot.slane %v412, %v418
    %v421 = vsub.f32 %v194, %v419
    %v422 = vmul.f32 %v146, %v394
    %v423 = vmul.f32 %v148, %v398
    %v424 = vmul.f32 %v152, %v394
    %v425 = vmul.f32 %v154, %v398
    %v426 = vmul.f32 %v158, %v394
    %v427 = vmul.f32 %v160, %v398
    %v428 = vmul.f32 %v164, %v394
    %v429 = vmul.f32 %v166, %v398
    %v430 = vmul.f32 %v170, %v394
    %v431 = vmul.f32 %v172, %v398
    %v432 = vmul.f32 %v176, %v394
    %v433 = vmul.f32 %v178, %v398
    %v434 = vmul.f32 %v182, %v394
    %v435 = vmul.f32 %v184, %v398
    %v436 = vmul.f32 %v188, %v394
    %v437 = vmul.f32 %v190, %v398
    %v439 = vlaneseq
    %v440 = vshrl.u32 %v439, 7
    %v441 = vsub.s32 0, %v440
    %v442 = vrot.slane %v421, %v441
    %v443 = vlaneseq
    %v444 = vshrl.u32 %v443, 7
    %v445 = vsub.s32 1, %v444
    %v446 = vrot.slane %v421, %v445
    %v449 = vadd.f32 %v422, %v442
    %v450 = vadd.f32 %v423, %v446
    %v451 = vadd.f32 %v424, %v442
    %v452 = vadd.f32 %v425, %v446
    %v453 = vadd.f32 %v426, %v442
    %v454 = vadd.f32 %v427, %v446
    %v455 = vadd.f32 %v428, %v442
    %v456 = vadd.f32 %v429, %v446
    %v457 = vadd.f32 %v430, %v442
    %v458 = vadd.f32 %v431, %v446
    %v459 = vadd.f32 %v432, %v442
    %v460 = vadd.f32 %v433, %v446
    %v461 = vadd.f32 %v434, %v442
    %v462 = vadd.f32 %v435, %v446
    %v463 = vadd.f32 %v436, %v442
    %v464 = vadd.f32 %v437, %v446
    %v465 = vmax.f32 %v449, 0.0
    %v466 = vmax.f32 %v450, 0.0
    %v467 = vmax.f32 %v451, 0.0
    %v468 = vmax.f32 %v452, 0.0
    %v469 = vmax.f32 %v453, 0.0
    %v470 = vmax.f32 %v454, 0.0
    %v471 = vmax.f32 %v455, 0.0
    %v472 = vmax.f32 %v456, 0.0
    %v473 = vmax.f32 %v457, 0.0
    %v474 = vmax.f32 %v458, 0.0
    %v475 = vmax.f32 %v459, 0.0
    %v476 = vmax.f32 %v460, 0.0
    %v477 = vmax.f32 %v461, 0.0
    %v478 = vmax.f32 %v462, 0.0
    %v479 = vmax.f32 %v463, 0.0
    %v480 = vmax.f32 %v464, 0.0
    %v481 = vld [vmem:[#allocation2] sm:$0xff]
    %v482 = vld [vmem:[#allocation2 + $0x8] sm:$0xff]
    %v483 = vld [vmem:[#allocation2 + $0x10] sm:$0xff]
    %v484 = vld [vmem:[#allocation2 + $0x18] sm:$0xff]
    %v485 = vld [vmem:[#allocation2 + $0x20] sm:$0xff]
    %v486 = vld [vmem:[#allocation2 + $0x28] sm:$0xff]
    %v487 = vld [vmem:[#allocation2 + $0x30] sm:$0xff]
    %v488 = vld [vmem:[#allocation2 + $0x38] sm:$0xff]
    %v489 = vld [vmem:[#allocation2 + $0x40] sm:$0xff]
    %v490 = vld [vmem:[#allocation2 + $0x48] sm:$0xff]
    %v491 = vld [vmem:[#allocation2 + $0x50] sm:$0xff]
    %v492 = vld [vmem:[#allocation2 + $0x58] sm:$0xff]
    %v493 = vld [vmem:[#allocation2 + $0x60] sm:$0xff]
    %v494 = vld [vmem:[#allocation2 + $0x68] sm:$0xff]
    %v495 = vld [vmem:[#allocation2 + $0x70] sm:$0xff]
    %v496 = vld [vmem:[#allocation2 + $0x78] sm:$0xff]
    %v497 = vld [vmem:[#allocation2 + $0x80] sm:$0xff]
    %v498 = vld [vmem:[#allocation2 + $0x88] sm:$0xff]
    %v499 = vld [vmem:[#allocation2 + $0x90] sm:$0xff]
    %v500 = vld [vmem:[#allocation2 + $0x98] sm:$0xff]
    %v501 = vld [vmem:[#allocation2 + $0xa0] sm:$0xff]
    %v502 = vld [vmem:[#allocation2 + $0xa8] sm:$0xff]
    %v503 = vld [vmem:[#allocation2 + $0xb0] sm:$0xff]
    %v504 = vld [vmem:[#allocation2 + $0xb8] sm:$0xff]
    %v505 = vld [vmem:[#allocation2 + $0xc0] sm:$0xff]
    %v506 = vld [vmem:[#allocation2 + $0xc8] sm:$0xff]
    %v507 = vld [vmem:[#allocation2 + $0xd0] sm:$0xff]
    %v508 = vld [vmem:[#allocation2 + $0xd8] sm:$0xff]
    %v509 = vld [vmem:[#allocation2 + $0xe0] sm:$0xff]
    %v510 = vld [vmem:[#allocation2 + $0xe8] sm:$0xff]
    %v511 = vld [vmem:[#allocation2 + $0xf0] sm:$0xff]
    %v512 = vld [vmem:[#allocation2 + $0xf8] sm:$0xff]
    %v513 = vld [vmem:[#allocation2 + $0x100] sm:$0xff]
    %v514 = vld [vmem:[#allocation2 + $0x108] sm:$0xff]
    %v515 = vld [vmem:[#allocation2 + $0x110] sm:$0xff]
    %v516 = vld [vmem:[#allocation2 + $0x118] sm:$0xff]
    %v517 = vld [vmem:[#allocation2 + $0x120] sm:$0xff]
    %v518 = vld [vmem:[#allocation2 + $0x128] sm:$0xff]
    %v519 = vld [vmem:[#allocation2 + $0x130] sm:$0xff]
    %v520 = vld [vmem:[#allocation2 + $0x138] sm:$0xff]
    %v521 = vld [vmem:[#allocation2 + $0x140] sm:$0xff]
    %v522 = vld [vmem:[#allocation2 + $0x148] sm:$0xff]
    %v523 = vld [vmem:[#allocation2 + $0x150] sm:$0xff]
    %v524 = vld [vmem:[#allocation2 + $0x158] sm:$0xff]
    %v525 = vld [vmem:[#allocation2 + $0x160] sm:$0xff]
    %v526 = vld [vmem:[#allocation2 + $0x168] sm:$0xff]
    %v527 = vld [vmem:[#allocation2 + $0x170] sm:$0xff]
    %v528 = vld [vmem:[#allocation2 + $0x178] sm:$0xff]
    %v529 = vld [vmem:[#allocation2 + $0x180] sm:$0xff]
    %v530 = vld [vmem:[#allocation2 + $0x188] sm:$0xff]
    %v531 = vld [vmem:[#allocation2 + $0x190] sm:$0xff]
    %v532 = vld [vmem:[#allocation2 + $0x198] sm:$0xff]
    %v533 = vld [vmem:[#allocation2 + $0x1a0] sm:$0xff]
    %v534 = vld [vmem:[#allocation2 + $0x1a8] sm:$0xff]
    %v535 = vld [vmem:[#allocation2 + $0x1b0] sm:$0xff]
    %v536 = vld [vmem:[#allocation2 + $0x1b8] sm:$0xff]
    %v537 = vld [vmem:[#allocation2 + $0x1c0] sm:$0xff]
    %v538 = vld [vmem:[#allocation2 + $0x1c8] sm:$0xff]
    %v539 = vld [vmem:[#allocation2 + $0x1d0] sm:$0xff]
    %v540 = vld [vmem:[#allocation2 + $0x1d8] sm:$0xff]
    %v541 = vld [vmem:[#allocation2 + $0x1e0] sm:$0xff]
    %v542 = vld [vmem:[#allocation2 + $0x1e8] sm:$0xff]
    %v543 = vld [vmem:[#allocation2 + $0x1f0] sm:$0xff]
    %v544 = vld [vmem:[#allocation2 + $0x1f8] sm:$0xff]
    %545 = vmatprep.subr.mxu0 %v512
    %546 = vmatpush1.msra.mxu0 %v511
    %547 = vmatprep.subr.mxu0 %v510
    %548 = vmatpush1.msra.mxu0 %v509
    %549 = vmatprep.subr.mxu0 %v508
    %550 = vmatpush1.msra.mxu0 %v507
    %551 = vmatprep.subr.mxu0 %v506
    %552 = vmatpush1.msra.mxu0 %v505
    %553 = vmatprep.subr.mxu0 %v504
    %554 = vmatpush1.msra.mxu0 %v503
    %555 = vmatprep.subr.mxu0 %v502
    %556 = vmatpush1.msra.mxu0 %v501
    %557 = vmatprep.subr.mxu0 %v500
    %558 = vmatpush1.msra.mxu0 %v499
    %559 = vmatprep.subr.mxu0 %v498
    %560 = vmatpush1.msra.mxu0 %v497
    %561 = vmatprep.subr.mxu0 %v496
    %562 = vmatpush1.msra.mxu0 %v495
    %563 = vmatprep.subr.mxu0 %v494
    %564 = vmatpush1.msra.mxu0 %v493
    %565 = vmatprep.subr.mxu0 %v492
    %566 = vmatpush1.msra.mxu0 %v491
    %567 = vmatprep.subr.mxu0 %v490
    %568 = vmatpush1.msra.mxu0 %v489
    %569 = vmatprep.subr.mxu0 %v488
    %570 = vmatpush1.msra.mxu0 %v487
    %571 = vmatprep.subr.mxu0 %v486
    %572 = vmatpush1.msra.mxu0 %v485
    %573 = vmatprep.subr.mxu0 %v484
    %574 = vmatpush1.msra.mxu0 %v483
    %575 = vmatprep.subr.mxu0 %v482
    %576 = vmatpush1.msra.mxu0 %v481
    %577 = vmatprep.subr.mxu0 %v544
    %578 = vmatpush2.msra.mxu0 %v543
    %579 = vmatprep.subr.mxu0 %v542
    %580 = vmatpush2.msra.mxu0 %v541
    %581 = vmatprep.subr.mxu0 %v540
    %582 = vmatpush2.msra.mxu0 %v539
    %583 = vmatprep.subr.mxu0 %v538
    %584 = vmatpush2.msra.mxu0 %v537
    %585 = vmatprep.subr.mxu0 %v536
    %586 = vmatpush2.msra.mxu0 %v535
    %587 = vmatprep.subr.mxu0 %v534
    %588 = vmatpush2.msra.mxu0 %v533
    %589 = vmatprep.subr.mxu0 %v532
    %590 = vmatpush2.msra.mxu0 %v531
    %591 = vmatprep.subr.mxu0 %v530
    %592 = vmatpush2.msra.mxu0 %v529
    %593 = vmatprep.subr.mxu0 %v528
    %594 = vmatpush2.msra.mxu0 %v527
    %595 = vmatprep.subr.mxu0 %v526
    %596 = vmatpush2.msra.mxu0 %v525
    %597 = vmatprep.subr.mxu0 %v524
    %598 = vmatpush2.msra.mxu0 %v523
    %599 = vmatprep.subr.mxu0 %v522
    %600 = vmatpush2.msra.mxu0 %v521
    %601 = vmatprep.subr.mxu0 %v520
    %602 = vmatpush2.msra.mxu0 %v519
    %603 = vmatprep.subr.mxu0 %v518
    %604 = vmatpush2.msra.mxu0 %v517
    %605 = vmatprep.subr.mxu0 %v516
    %606 = vmatpush2.msra.mxu0 %v515
    %607 = vmatprep.subr.mxu0 %v514
    %608 = vmatpush2.msra.mxu0 %v513
    %609 = vmatprep.mubr.f32.mxu0 %v466
    %610 = vmatmul.mubr.f32.gmra.mxu0 %v465
    %v611 = vpop.f32.mrf.mxu0
    %v612 = vadd.f32 0.0, %v611
    %v613 = vpop.f32.mrf.mxu0
    %v614 = vadd.f32 0.0, %v613
    %615 = vmatprep.mubr.f32.mxu0 %v468
    %616 = vmatmul.mubr.f32.gmra.mxu0 %v467
    %v617 = vpop.f32.mrf.mxu0
    %v618 = vadd.f32 0.0, %v617
    %v619 = vpop.f32.mrf.mxu0
    %v620 = vadd.f32 0.0, %v619
    %621 = vmatprep.mubr.f32.mxu0 %v470
    %622 = vmatmul.mubr.f32.gmra.mxu0 %v469
    %v623 = vpop.f32.mrf.mxu0
    %v624 = vadd.f32 0.0, %v623
    %v625 = vpop.f32.mrf.mxu0
    %v626 = vadd.f32 0.0, %v625
    %627 = vmatprep.mubr.f32.mxu0 %v472
    %628 = vmatmul.mubr.f32.gmra.mxu0 %v471
    %v629 = vpop.f32.mrf.mxu0
    %v630 = vadd.f32 0.0, %v629
    %v631 = vpop.f32.mrf.mxu0
    %v632 = vadd.f32 0.0, %v631
    %633 = vmatprep.mubr.f32.mxu0 %v474
    %634 = vmatmul.mubr.f32.gmra.mxu0 %v473
    %v635 = vpop.f32.mrf.mxu0
    %v636 = vadd.f32 0.0, %v635
    %v637 = vpop.f32.mrf.mxu0
    %v638 = vadd.f32 0.0, %v637
    %639 = vmatprep.mubr.f32.mxu0 %v476
    %640 = vmatmul.mubr.f32.gmra.mxu0 %v475
    %v641 = vpop.f32.mrf.mxu0
    %v642 = vadd.f32 0.0, %v641
    %v643 = vpop.f32.mrf.mxu0
    %v644 = vadd.f32 0.0, %v643
    %645 = vmatprep.mubr.f32.mxu0 %v478
    %646 = vmatmul.mubr.f32.gmra.mxu0 %v477
    %v647 = vpop.f32.mrf.mxu0
    %v648 = vadd.f32 0.0, %v647
    %v649 = vpop.f32.mrf.mxu0
    %v650 = vadd.f32 0.0, %v649
    %651 = vmatprep.mubr.f32.mxu0 %v480
    %652 = vmatmul.mubr.f32.gmra.mxu0 %v479
    %v653 = vpop.f32.mrf.mxu0
    %v654 = vadd.f32 0.0, %v653
    %v655 = vpop.f32.mrf.mxu0
    %v656 = vadd.f32 0.0, %v655
    %657 = vdwg.mxu0
    %s658 = scalar_lea.vmem %s5, 2
    %v659 = vld [vmem:[%s658] ss:$8 sm:$0x3]
    %s660 = scalar_lea.vmem %s5, 3
    %v661 = vld [vmem:[%s660] ss:$8 sm:$0x3]
    %662 = vmatprep.subr.mxu0 0.0
    %663 = vmatpush1.msra.mxu0 0.0
    %664 = vmatprep.subr.mxu0 0.0
    %665 = vmatpush1.msra.mxu0 0.0
    %666 = vmatprep.subr.mxu0 0.0
    %667 = vmatpush1.msra.mxu0 0.0
    %668 = vmatprep.subr.mxu0 0.0
    %669 = vmatpush1.msra.mxu0 0.0
    %670 = vmatprep.subr.mxu0 0.0
    %671 = vmatpush1.msra.mxu0 0.0
    %672 = vmatprep.subr.mxu0 0.0
    %673 = vmatpush1.msra.mxu0 0.0
    %674 = vmatprep.subr.mxu0 0.0
    %675 = vmatpush1.msra.mxu0 0.0
    %676 = vmatprep.subr.mxu0 0.0
    %677 = vmatpush1.msra.mxu0 0.0
    %678 = vmatprep.subr.mxu0 %v656
    %679 = vmatpush1.msra.mxu0 %v654
    %680 = vmatprep.subr.mxu0 %v650
    %681 = vmatpush1.msra.mxu0 %v648
    %682 = vmatprep.subr.mxu0 %v644
    %683 = vmatpush1.msra.mxu0 %v642
    %684 = vmatprep.subr.mxu0 %v638
    %685 = vmatpush1.msra.mxu0 %v636
    %686 = vmatprep.subr.mxu0 %v632
    %687 = vmatpush1.msra.mxu0 %v630
    %688 = vmatprep.subr.mxu0 %v626
    %689 = vmatpush1.msra.mxu0 %v624
    %690 = vmatprep.subr.mxu0 %v620
    %691 = vmatpush1.msra.mxu0 %v618
    %692 = vmatprep.subr.mxu0 %v614
    %693 = vmatpush1.msra.mxu0 %v612
    %694 = vmatprep.subr.mxu0 0.0
    %695 = vmatpush2.msra.mxu0 0.0
    %696 = vmatprep.subr.mxu0 0.0
    %697 = vmatpush2.msra.mxu0 0.0
    %698 = vmatprep.subr.mxu0 0.0
    %699 = vmatpush2.msra.mxu0 0.0
    %700 = vmatprep.subr.mxu0 0.0
    %701 = vmatpush2.msra.mxu0 0.0
    %702 = vmatprep.subr.mxu0 0.0
    %703 = vmatpush2.msra.mxu0 0.0
    %704 = vmatprep.subr.mxu0 0.0
    %705 = vmatpush2.msra.mxu0 0.0
    %706 = vmatprep.subr.mxu0 0.0
    %707 = vmatpush2.msra.mxu0 0.0
    %708 = vmatprep.subr.mxu0 0.0
    %709 = vmatpush2.msra.mxu0 0.0
    %710 = vmatprep.subr.mxu0 0.0
    %711 = vmatpush2.msra.mxu0 0.0
    %712 = vmatprep.subr.mxu0 0.0
    %713 = vmatpush2.msra.mxu0 0.0
    %714 = vmatprep.subr.mxu0 0.0
    %715 = vmatpush2.msra.mxu0 0.0
    %716 = vmatprep.subr.mxu0 0.0
    %717 = vmatpush2.msra.mxu0 0.0
    %718 = vmatprep.subr.mxu0 0.0
    %719 = vmatpush2.msra.mxu0 0.0
    %720 = vmatprep.subr.mxu0 0.0
    %721 = vmatpush2.msra.mxu0 0.0
    %722 = vmatprep.subr.mxu0 0.0
    %723 = vmatpush2.msra.mxu0 0.0
    %724 = vmatprep.subr.mxu0 0.0
    %725 = vmatpush2.msra.mxu0 0.0
    %726 = vmatprep.mubr.f32.mxu0 0.0
    %727 = vmatmul.mubr.f32.gmra.mxu0 %v197
    %v728 = vpop.f32.mrf.mxu0
    %v729 = vadd.f32 0.0, %v728
    %v730 = vpop.f32.mrf.mxu0
    %v731 = vadd.f32 0.0, %v730
    %732 = vdwg.mxu0
    %v733 = vmul.f32 %v729, 0.015625
    %v734 = vmul.f32 %v731, 0.015625
    %v735 = vmul.f32 %v612, %v612
    %v736 = vmul.f32 %v614, %v614
    %v737 = vmul.f32 %v618, %v618
    %v738 = vmul.f32 %v620, %v620
    %v739 = vmul.f32 %v624, %v624
    %v740 = vmul.f32 %v626, %v626
    %v741 = vmul.f32 %v630, %v630
    %v742 = vmul.f32 %v632, %v632
    %v743 = vmul.f32 %v636, %v636
    %v744 = vmul.f32 %v638, %v638
    %v745 = vmul.f32 %v642, %v642
    %v746 = vmul.f32 %v644, %v644
    %v747 = vmul.f32 %v648, %v648
    %v748 = vmul.f32 %v650, %v650
    %v749 = vmul.f32 %v654, %v654
    %v750 = vmul.f32 %v656, %v656
    %751 = vmatprep.subr.mxu0 0.0
    %752 = vmatpush1.msra.mxu0 0.0
    %753 = vmatprep.subr.mxu0 0.0
    %754 = vmatpush1.msra.mxu0 0.0
    %755 = vmatprep.subr.mxu0 0.0
    %756 = vmatpush1.msra.mxu0 0.0
    %757 = vmatprep.subr.mxu0 0.0
    %758 = vmatpush1.msra.mxu0 0.0
    %759 = vmatprep.subr.mxu0 0.0
    %760 = vmatpush1.msra.mxu0 0.0
    %761 = vmatprep.subr.mxu0 0.0
    %762 = vmatpush1.msra.mxu0 0.0
    %763 = vmatprep.subr.mxu0 0.0
    %764 = vmatpush1.msra.mxu0 0.0
    %765 = vmatprep.subr.mxu0 0.0
    %766 = vmatpush1.msra.mxu0 0.0
    %767 = vmatprep.subr.mxu0 %v750
    %768 = vmatpush1.msra.mxu0 %v749
    %769 = vmatprep.subr.mxu0 %v748
    %770 = vmatpush1.msra.mxu0 %v747
    %771 = vmatprep.subr.mxu0 %v746
    %772 = vmatpush1.msra.mxu0 %v745
    %773 = vmatprep.subr.mxu0 %v744
    %774 = vmatpush1.msra.mxu0 %v743
    %775 = vmatprep.subr.mxu0 %v742
    %776 = vmatpush1.msra.mxu0 %v741
    %777 = vmatprep.subr.mxu0 %v740
    %778 = vmatpush1.msra.mxu0 %v739
    %779 = vmatprep.subr.mxu0 %v738
    %780 = vmatpush1.msra.mxu0 %v737
    %781 = vmatprep.subr.mxu0 %v736
    %782 = vmatpush1.msra.mxu0 %v735
    %783 = vmatprep.subr.mxu0 0.0
    %784 = vmatpush2.msra.mxu0 0.0
    %785 = vmatprep.subr.mxu0 0.0
    %786 = vmatpush2.msra.mxu0 0.0
    %787 = vmatprep.subr.mxu0 0.0
    %788 = vmatpush2.msra.mxu0 0.0
    %789 = vmatprep.subr.mxu0 0.0
    %790 = vmatpush2.msra.mxu0 0.0
    %791 = vmatprep.subr.mxu0 0.0
    %792 = vmatpush2.msra.mxu0 0.0
    %793 = vmatprep.subr.mxu0 0.0
    %794 = vmatpush2.msra.mxu0 0.0
    %795 = vmatprep.subr.mxu0 0.0
    %796 = vmatpush2.msra.mxu0 0.0
    %797 = vmatprep.subr.mxu0 0.0
    %798 = vmatpush2.msra.mxu0 0.0
    %799 = vmatprep.subr.mxu0 0.0
    %800 = vmatpush2.msra.mxu0 0.0
    %801 = vmatprep.subr.mxu0 0.0
    %802 = vmatpush2.msra.mxu0 0.0
    %803 = vmatprep.subr.mxu0 0.0
    %804 = vmatpush2.msra.mxu0 0.0
    %805 = vmatprep.subr.mxu0 0.0
    %806 = vmatpush2.msra.mxu0 0.0
    %807 = vmatprep.subr.mxu0 0.0
    %808 = vmatpush2.msra.mxu0 0.0
    %809 = vmatprep.subr.mxu0 0.0
    %810 = vmatpush2.msra.mxu0 0.0
    %811 = vmatprep.subr.mxu0 0.0
    %812 = vmatpush2.msra.mxu0 0.0
    %813 = vmatprep.subr.mxu0 0.0
    %814 = vmatpush2.msra.mxu0 0.0
    %815 = vmatprep.mubr.f32.mxu0 0.0
    %816 = vmatmul.mubr.f32.gmra.mxu0 %v197
    %v817 = vpop.f32.mrf.mxu0
    %v818 = vadd.f32 0.0, %v817
    %v819 = vpop.f32.mrf.mxu0
    %v820 = vadd.f32 0.0, %v819
    %821 = vdwg.mxu0
    %v822 = vmul.f32 %v818, 0.015625
    %v823 = vmul.f32 %v820, 0.015625
    %v824 = vmul.f32 %v733, %v733
    %v825 = vmul.f32 %v734, %v734
    %v826 = vsub.f32 %v822, %v824
    %v827 = vsub.f32 %v823, %v825
    %v828 = vmax.f32 %v826, 0.0
    %v829 = vmax.f32 %v827, 0.0
    %v830 = vadd.f32 %v828, 1e-05
    %v831 = vadd.f32 %v829, 1e-05
    %v832 = vrsqrt.pop %v830
    %v833 = vrsqrt.pop %v831
    %v836 = vcombine.low %v832, %v833
    %v838 = vunpack.c.l.s4 1966171168
    %v839 = vunpack.c.0.s8 %v838
    %v840 = vlaneseq
    %v841 = vshrl.u32 %v840, 7
    %v842 = vsub.s32 %v839, %v841
    %v843 = vrot.slane %v836, %v842
    %v845 = vunpack.c.l.s4 1966171168
    %v846 = vunpack.c.0.s8 %v845
    %v847 = vlaneseq
    %v848 = vshrl.u32 %v847, 7
    %v849 = vsub.s32 %v846, %v848
    %v850 = vrot.slane %v843, %v849
    %v852 = vmul.f32 %v659, %v850
    %v854 = vlaneseq
    %v855 = vshrl.u32 %v854, 7
    %v856 = vsub.s32 0, %v855
    %v857 = vrot.slane %v852, %v856
    %v858 = vlaneseq
    %v859 = vshrl.u32 %v858, 7
    %v860 = vsub.s32 1, %v859
    %v861 = vrot.slane %v852, %v860
    %v864 = vmul.f32 %v733, %v857
    %v865 = vmul.f32 %v734, %v861
    %v868 = vcombine.low %v864, %v865
    %v870 = vunpack.c.l.s4 1966171168
    %v871 = vunpack.c.0.s8 %v870
    %v872 = vlaneseq
    %v873 = vshrl.u32 %v872, 7
    %v874 = vsub.s32 %v871, %v873
    %v875 = vrot.slane %v868, %v874
    %v877 = vunpack.c.l.s4 1966171168
    %v878 = vunpack.c.0.s8 %v877
    %v879 = vlaneseq
    %v880 = vshrl.u32 %v879, 7
    %v881 = vsub.s32 %v878, %v880
    %v882 = vrot.slane %v875, %v881
    %v884 = vsub.f32 %v661, %v882
    %v885 = vmul.f32 %v612, %v857
    %v886 = vmul.f32 %v614, %v861
    %v887 = vmul.f32 %v618, %v857
    %v888 = vmul.f32 %v620, %v861
    %v889 = vmul.f32 %v624, %v857
    %v890 = vmul.f32 %v626, %v861
    %v891 = vmul.f32 %v630, %v857
    %v892 = vmul.f32 %v632, %v861
    %v893 = vmul.f32 %v636, %v857
    %v894 = vmul.f32 %v638, %v861
    %v895 = vmul.f32 %v642, %v857
    %v896 = vmul.f32 %v644, %v861
    %v897 = vmul.f32 %v648, %v857
    %v898 = vmul.f32 %v650, %v861
    %v899 = vmul.f32 %v654, %v857
    %v900 = vmul.f32 %v656, %v861
    %v902 = vlaneseq
    %v903 = vshrl.u32 %v902, 7
    %v904 = vsub.s32 0, %v903
    %v905 = vrot.slane %v884, %v904
    %v906 = vlaneseq
    %v907 = vshrl.u32 %v906, 7
    %v908 = vsub.s32 1, %v907
    %v909 = vrot.slane %v884, %v908
    %v912 = vadd.f32 %v885, %v905
    %v913 = vadd.f32 %v886, %v909
    %v914 = vadd.f32 %v887, %v905
    %v915 = vadd.f32 %v888, %v909
    %v916 = vadd.f32 %v889, %v905
    %v917 = vadd.f32 %v890, %v909
    %v918 = vadd.f32 %v891, %v905
    %v919 = vadd.f32 %v892, %v909
    %v920 = vadd.f32 %v893, %v905
    %v921 = vadd.f32 %v894, %v909
    %v922 = vadd.f32 %v895, %v905
    %v923 = vadd.f32 %v896, %v909
    %v924 = vadd.f32 %v897, %v905
    %v925 = vadd.f32 %v898, %v909
    %v926 = vadd.f32 %v899, %v905
    %v927 = vadd.f32 %v900, %v909
    %v928 = vadd.f32 %v912, %v465
    %v929 = vadd.f32 %v913, %v466
    %v930 = vadd.f32 %v914, %v467
    %v931 = vadd.f32 %v915, %v468
    %v932 = vadd.f32 %v916, %v469
    %v933 = vadd.f32 %v917, %v470
    %v934 = vadd.f32 %v918, %v471
    %v935 = vadd.f32 %v919, %v472
    %v936 = vadd.f32 %v920, %v473
    %v937 = vadd.f32 %v921, %v474
    %v938 = vadd.f32 %v922, %v475
    %v939 = vadd.f32 %v923, %v476
    %v940 = vadd.f32 %v924, %v477
    %v941 = vadd.f32 %v925, %v478
    %v942 = vadd.f32 %v926, %v479
    %v943 = vadd.f32 %v927, %v480
    %v944 = vmax.f32 %v928, 0.0
    %v945 = vmax.f32 %v929, 0.0
    %v946 = vmax.f32 %v930, 0.0
    %v947 = vmax.f32 %v931, 0.0
    %v948 = vmax.f32 %v932, 0.0
    %v949 = vmax.f32 %v933, 0.0
    %v950 = vmax.f32 %v934, 0.0
    %v951 = vmax.f32 %v935, 0.0
    %v952 = vmax.f32 %v936, 0.0
    %v953 = vmax.f32 %v937, 0.0
    %v954 = vmax.f32 %v938, 0.0
    %v955 = vmax.f32 %v939, 0.0
    %v956 = vmax.f32 %v940, 0.0
    %v957 = vmax.f32 %v941, 0.0
    %v958 = vmax.f32 %v942, 0.0
    %v959 = vmax.f32 %v943, 0.0
    %s960 = scalar_lea.vmem [#allocation2], 512
    %v961 = vld [vmem:[%s960] sm:$0xff]
    %v962 = vld [vmem:[%s960 + $0x8] sm:$0xff]
    %v963 = vld [vmem:[%s960 + $0x10] sm:$0xff]
    %v964 = vld [vmem:[%s960 + $0x18] sm:$0xff]
    %v965 = vld [vmem:[%s960 + $0x20] sm:$0xff]
    %v966 = vld [vmem:[%s960 + $0x28] sm:$0xff]
    %v967 = vld [vmem:[%s960 + $0x30] sm:$0xff]
    %v968 = vld [vmem:[%s960 + $0x38] sm:$0xff]
    %v969 = vld [vmem:[%s960 + $0x40] sm:$0xff]
    %v970 = vld [vmem:[%s960 + $0x48] sm:$0xff]
    %v971 = vld [vmem:[%s960 + $0x50] sm:$0xff]
    %v972 = vld [vmem:[%s960 + $0x58] sm:$0xff]
    %v973 = vld [vmem:[%s960 + $0x60] sm:$0xff]
    %v974 = vld [vmem:[%s960 + $0x68] sm:$0xff]
    %v975 = vld [vmem:[%s960 + $0x70] sm:$0xff]
    %v976 = vld [vmem:[%s960 + $0x78] sm:$0xff]
    %v977 = vld [vmem:[%s960 + $0x80] sm:$0xff]
    %v978 = vld [vmem:[%s960 + $0x88] sm:$0xff]
    %v979 = vld [vmem:[%s960 + $0x90] sm:$0xff]
    %v980 = vld [vmem:[%s960 + $0x98] sm:$0xff]
    %v981 = vld [vmem:[%s960 + $0xa0] sm:$0xff]
    %v982 = vld [vmem:[%s960 + $0xa8] sm:$0xff]
    %v983 = vld [vmem:[%s960 + $0xb0] sm:$0xff]
    %v984 = vld [vmem:[%s960 + $0xb8] sm:$0xff]
    %v985 = vld [vmem:[%s960 + $0xc0] sm:$0xff]
    %v986 = vld [vmem:[%s960 + $0xc8] sm:$0xff]
    %v987 = vld [vmem:[%s960 + $0xd0] sm:$0xff]
    %v988 = vld [vmem:[%s960 + $0xd8] sm:$0xff]
    %v989 = vld [vmem:[%s960 + $0xe0] sm:$0xff]
    %v990 = vld [vmem:[%s960 + $0xe8] sm:$0xff]
    %v991 = vld [vmem:[%s960 + $0xf0] sm:$0xff]
    %v992 = vld [vmem:[%s960 + $0xf8] sm:$0xff]
    %v993 = vld [vmem:[%s960 + $0x100] sm:$0xff]
    %v994 = vld [vmem:[%s960 + $0x108] sm:$0xff]
    %v995 = vld [vmem:[%s960 + $0x110] sm:$0xff]
    %v996 = vld [vmem:[%s960 + $0x118] sm:$0xff]
    %v997 = vld [vmem:[%s960 + $0x120] sm:$0xff]
    %v998 = vld [vmem:[%s960 + $0x128] sm:$0xff]
    %v999 = vld [vmem:[%s960 + $0x130] sm:$0xff]
    %v1000 = vld [vmem:[%s960 + $0x138] sm:$0xff]
    %v1001 = vld [vmem:[%s960 + $0x140] sm:$0xff]
    %v1002 = vld [vmem:[%s960 + $0x148] sm:$0xff]
    %v1003 = vld [vmem:[%s960 + $0x150] sm:$0xff]
    %v1004 = vld [vmem:[%s960 + $0x158] sm:$0xff]
    %v1005 = vld [vmem:[%s960 + $0x160] sm:$0xff]
    %v1006 = vld [vmem:[%s960 + $0x168] sm:$0xff]
    %v1007 = vld [vmem:[%s960 + $0x170] sm:$0xff]
    %v1008 = vld [vmem:[%s960 + $0x178] sm:$0xff]
    %v1009 = vld [vmem:[%s960 + $0x180] sm:$0xff]
    %v1010 = vld [vmem:[%s960 + $0x188] sm:$0xff]
    %v1011 = vld [vmem:[%s960 + $0x190] sm:$0xff]
    %v1012 = vld [vmem:[%s960 + $0x198] sm:$0xff]
    %v1013 = vld [vmem:[%s960 + $0x1a0] sm:$0xff]
    %v1014 = vld [vmem:[%s960 + $0x1a8] sm:$0xff]
    %v1015 = vld [vmem:[%s960 + $0x1b0] sm:$0xff]
    %v1016 = vld [vmem:[%s960 + $0x1b8] sm:$0xff]
    %v1017 = vld [vmem:[%s960 + $0x1c0] sm:$0xff]
    %v1018 = vld [vmem:[%s960 + $0x1c8] sm:$0xff]
    %v1019 = vld [vmem:[%s960 + $0x1d0] sm:$0xff]
    %v1020 = vld [vmem:[%s960 + $0x1d8] sm:$0xff]
    %v1021 = vld [vmem:[%s960 + $0x1e0] sm:$0xff]
    %v1022 = vld [vmem:[%s960 + $0x1e8] sm:$0xff]
    %v1023 = vld [vmem:[%s960 + $0x1f0] sm:$0xff]
    %v1024 = vld [vmem:[%s960 + $0x1f8] sm:$0xff]
    %1025 = vmatprep.subr.mxu0 %v992
    %1026 = vmatpush1.msra.mxu0 %v991
    %1027 = vmatprep.subr.mxu0 %v990
    %1028 = vmatpush1.msra.mxu0 %v989
    %1029 = vmatprep.subr.mxu0 %v988
    %1030 = vmatpush1.msra.mxu0 %v987
    %1031 = vmatprep.subr.mxu0 %v986
    %1032 = vmatpush1.msra.mxu0 %v985
    %1033 = vmatprep.subr.mxu0 %v984
    %1034 = vmatpush1.msra.mxu0 %v983
    %1035 = vmatprep.subr.mxu0 %v982
    %1036 = vmatpush1.msra.mxu0 %v981
    %1037 = vmatprep.subr.mxu0 %v980
    %1038 = vmatpush1.msra.mxu0 %v979
    %1039 = vmatprep.subr.mxu0 %v978
    %1040 = vmatpush1.msra.mxu0 %v977
    %1041 = vmatprep.subr.mxu0 %v976
    %1042 = vmatpush1.msra.mxu0 %v975
    %1043 = vmatprep.subr.mxu0 %v974
    %1044 = vmatpush1.msra.mxu0 %v973
    %1045 = vmatprep.subr.mxu0 %v972
    %1046 = vmatpush1.msra.mxu0 %v971
    %1047 = vmatprep.subr.mxu0 %v970
    %1048 = vmatpush1.msra.mxu0 %v969
    %1049 = vmatprep.subr.mxu0 %v968
    %1050 = vmatpush1.msra.mxu0 %v967
    %1051 = vmatprep.subr.mxu0 %v966
    %1052 = vmatpush1.msra.mxu0 %v965
    %1053 = vmatprep.subr.mxu0 %v964
    %1054 = vmatpush1.msra.mxu0 %v963
    %1055 = vmatprep.subr.mxu0 %v962
    %1056 = vmatpush1.msra.mxu0 %v961
    %1057 = vmatprep.subr.mxu0 %v1024
    %1058 = vmatpush2.msra.mxu0 %v1023
    %1059 = vmatprep.subr.mxu0 %v1022
    %1060 = vmatpush2.msra.mxu0 %v1021
    %1061 = vmatprep.subr.mxu0 %v1020
    %1062 = vmatpush2.msra.mxu0 %v1019
    %1063 = vmatprep.subr.mxu0 %v1018
    %1064 = vmatpush2.msra.mxu0 %v1017
    %1065 = vmatprep.subr.mxu0 %v1016
    %1066 = vmatpush2.msra.mxu0 %v1015
    %1067 = vmatprep.subr.mxu0 %v1014
    %1068 = vmatpush2.msra.mxu0 %v1013
    %1069 = vmatprep.subr.mxu0 %v1012
    %1070 = vmatpush2.msra.mxu0 %v1011
    %1071 = vmatprep.subr.mxu0 %v1010
    %1072 = vmatpush2.msra.mxu0 %v1009
    %1073 = vmatprep.subr.mxu0 %v1008
    %1074 = vmatpush2.msra.mxu0 %v1007
    %1075 = vmatprep.subr.mxu0 %v1006
    %1076 = vmatpush2.msra.mxu0 %v1005
    %1077 = vmatprep.subr.mxu0 %v1004
    %1078 = vmatpush2.msra.mxu0 %v1003
    %1079 = vmatprep.subr.mxu0 %v1002
    %1080 = vmatpush2.msra.mxu0 %v1001
    %1081 = vmatprep.subr.mxu0 %v1000
    %1082 = vmatpush2.msra.mxu0 %v999
    %1083 = vmatprep.subr.mxu0 %v998
    %1084 = vmatpush2.msra.mxu0 %v997
    %1085 = vmatprep.subr.mxu0 %v996
    %1086 = vmatpush2.msra.mxu0 %v995
    %1087 = vmatprep.subr.mxu0 %v994
    %1088 = vmatpush2.msra.mxu0 %v993
    %1089 = vmatprep.mubr.f32.mxu0 %v945
    %1090 = vmatmul.mubr.f32.gmra.mxu0 %v944
    %v1091 = vpop.f32.mrf.mxu0
    %v1092 = vadd.f32 0.0, %v1091
    %v1093 = vpop.f32.mrf.mxu0
    %v1094 = vadd.f32 0.0, %v1093
    %1095 = vmatprep.mubr.f32.mxu0 %v947
    %1096 = vmatmul.mubr.f32.gmra.mxu0 %v946
    %v1097 = vpop.f32.mrf.mxu0
    %v1098 = vadd.f32 0.0, %v1097
    %v1099 = vpop.f32.mrf.mxu0
    %v1100 = vadd.f32 0.0, %v1099
    %1101 = vmatprep.mubr.f32.mxu0 %v949
    %1102 = vmatmul.mubr.f32.gmra.mxu0 %v948
    %v1103 = vpop.f32.mrf.mxu0
    %v1104 = vadd.f32 0.0, %v1103
    %v1105 = vpop.f32.mrf.mxu0
    %v1106 = vadd.f32 0.0, %v1105
    %1107 = vmatprep.mubr.f32.mxu0 %v951
    %1108 = vmatmul.mubr.f32.gmra.mxu0 %v950
    %v1109 = vpop.f32.mrf.mxu0
    %v1110 = vadd.f32 0.0, %v1109
    %v1111 = vpop.f32.mrf.mxu0
    %v1112 = vadd.f32 0.0, %v1111
    %1113 = vmatprep.mubr.f32.mxu0 %v953
    %1114 = vmatmul.mubr.f32.gmra.mxu0 %v952
    %v1115 = vpop.f32.mrf.mxu0
    %v1116 = vadd.f32 0.0, %v1115
    %v1117 = vpop.f32.mrf.mxu0
    %v1118 = vadd.f32 0.0, %v1117
    %1119 = vmatprep.mubr.f32.mxu0 %v955
    %1120 = vmatmul.mubr.f32.gmra.mxu0 %v954
    %v1121 = vpop.f32.mrf.mxu0
    %v1122 = vadd.f32 0.0, %v1121
    %v1123 = vpop.f32.mrf.mxu0
    %v1124 = vadd.f32 0.0, %v1123
    %1125 = vmatprep.mubr.f32.mxu0 %v957
    %1126 = vmatmul.mubr.f32.gmra.mxu0 %v956
    %v1127 = vpop.f32.mrf.mxu0
    %v1128 = vadd.f32 0.0, %v1127
    %v1129 = vpop.f32.mrf.mxu0
    %v1130 = vadd.f32 0.0, %v1129
    %1131 = vmatprep.mubr.f32.mxu0 %v959
    %1132 = vmatmul.mubr.f32.gmra.mxu0 %v958
    %v1133 = vpop.f32.mrf.mxu0
    %v1134 = vadd.f32 0.0, %v1133
    %v1135 = vpop.f32.mrf.mxu0
    %v1136 = vadd.f32 0.0, %v1135
    %1137 = vdwg.mxu0
    %s1138 = scalar_lea.vmem %s5, 4
    %v1139 = vld [vmem:[%s1138] ss:$8 sm:$0x3]
    %s1140 = scalar_lea.vmem %s5, 5
    %v1141 = vld [vmem:[%s1140] ss:$8 sm:$0x3]
    %1142 = vmatprep.subr.mxu0 0.0
    %1143 = vmatpush1.msra.mxu0 0.0
    %1144 = vmatprep.subr.mxu0 0.0
    %1145 = vmatpush1.msra.mxu0 0.0
    %1146 = vmatprep.subr.mxu0 0.0
    %1147 = vmatpush1.msra.mxu0 0.0
    %1148 = vmatprep.subr.mxu0 0.0
    %1149 = vmatpush1.msra.mxu0 0.0
    %1150 = vmatprep.subr.mxu0 0.0
    %1151 = vmatpush1.msra.mxu0 0.0
    %1152 = vmatprep.subr.mxu0 0.0
    %1153 = vmatpush1.msra.mxu0 0.0
    %1154 = vmatprep.subr.mxu0 0.0
    %1155 = vmatpush1.msra.mxu0 0.0
    %1156 = vmatprep.subr.mxu0 0.0
    %1157 = vmatpush1.msra.mxu0 0.0
    %1158 = vmatprep.subr.mxu0 %v1136
    %1159 = vmatpush1.msra.mxu0 %v1134
    %1160 = vmatprep.subr.mxu0 %v1130
    %1161 = vmatpush1.msra.mxu0 %v1128
    %1162 = vmatprep.subr.mxu0 %v1124
    %1163 = vmatpush1.msra.mxu0 %v1122
    %1164 = vmatprep.subr.mxu0 %v1118
    %1165 = vmatpush1.msra.mxu0 %v1116
    %1166 = vmatprep.subr.mxu0 %v1112
    %1167 = vmatpush1.msra.mxu0 %v1110
    %1168 = vmatprep.subr.mxu0 %v1106
    %1169 = vmatpush1.msra.mxu0 %v1104
    %1170 = vmatprep.subr.mxu0 %v1100
    %1171 = vmatpush1.msra.mxu0 %v1098
    %1172 = vmatprep.subr.mxu0 %v1094
    %1173 = vmatpush1.msra.mxu0 %v1092
    %1174 = vmatprep.subr.mxu0 0.0
    %1175 = vmatpush2.msra.mxu0 0.0
    %1176 = vmatprep.subr.mxu0 0.0
    %1177 = vmatpush2.msra.mxu0 0.0
    %1178 = vmatprep.subr.mxu0 0.0
    %1179 = vmatpush2.msra.mxu0 0.0
    %1180 = vmatprep.subr.mxu0 0.0
    %1181 = vmatpush2.msra.mxu0 0.0
    %1182 = vmatprep.subr.mxu0 0.0
    %1183 = vmatpush2.msra.mxu0 0.0
    %1184 = vmatprep.subr.mxu0 0.0
    %1185 = vmatpush2.msra.mxu0 0.0
    %1186 = vmatprep.subr.mxu0 0.0
    %1187 = vmatpush2.msra.mxu0 0.0
    %1188 = vmatprep.subr.mxu0 0.0
    %1189 = vmatpush2.msra.mxu0 0.0
    %1190 = vmatprep.subr.mxu0 0.0
    %1191 = vmatpush2.msra.mxu0 0.0
    %1192 = vmatprep.subr.mxu0 0.0
    %1193 = vmatpush2.msra.mxu0 0.0
    %1194 = vmatprep.subr.mxu0 0.0
    %1195 = vmatpush2.msra.mxu0 0.0
    %1196 = vmatprep.subr.mxu0 0.0
    %1197 = vmatpush2.msra.mxu0 0.0
    %1198 = vmatprep.subr.mxu0 0.0
    %1199 = vmatpush2.msra.mxu0 0.0
    %1200 = vmatprep.subr.mxu0 0.0
    %1201 = vmatpush2.msra.mxu0 0.0
    %1202 = vmatprep.subr.mxu0 0.0
    %1203 = vmatpush2.msra.mxu0 0.0
    %1204 = vmatprep.subr.mxu0 0.0
    %1205 = vmatpush2.msra.mxu0 0.0
    %1206 = vmatprep.mubr.f32.mxu0 0.0
    %1207 = vmatmul.mubr.f32.gmra.mxu0 %v197
    %v1208 = vpop.f32.mrf.mxu0
    %v1209 = vadd.f32 0.0, %v1208
    %v1210 = vpop.f32.mrf.mxu0
    %v1211 = vadd.f32 0.0, %v1210
    %1212 = vdwg.mxu0
    %v1213 = vmul.f32 %v1209, 0.015625
    %v1214 = vmul.f32 %v1211, 0.015625
    %v1215 = vmul.f32 %v1092, %v1092
    %v1216 = vmul.f32 %v1094, %v1094
    %v1217 = vmul.f32 %v1098, %v1098
    %v1218 = vmul.f32 %v1100, %v1100
    %v1219 = vmul.f32 %v1104, %v1104
    %v1220 = vmul.f32 %v1106, %v1106
    %v1221 = vmul.f32 %v1110, %v1110
    %v1222 = vmul.f32 %v1112, %v1112
    %v1223 = vmul.f32 %v1116, %v1116
    %v1224 = vmul.f32 %v1118, %v1118
    %v1225 = vmul.f32 %v1122, %v1122
    %v1226 = vmul.f32 %v1124, %v1124
    %v1227 = vmul.f32 %v1128, %v1128
    %v1228 = vmul.f32 %v1130, %v1130
    %v1229 = vmul.f32 %v1134, %v1134
    %v1230 = vmul.f32 %v1136, %v1136
    %1231 = vmatprep.subr.mxu0 0.0
    %1232 = vmatpush1.msra.mxu0 0.0
    %1233 = vmatprep.subr.mxu0 0.0
    %1234 = vmatpush1.msra.mxu0 0.0
    %1235 = vmatprep.subr.mxu0 0.0
    %1236 = vmatpush1.msra.mxu0 0.0
    %1237 = vmatprep.subr.mxu0 0.0
    %1238 = vmatpush1.msra.mxu0 0.0
    %1239 = vmatprep.subr.mxu0 0.0
    %1240 = vmatpush1.msra.mxu0 0.0
    %1241 = vmatprep.subr.mxu0 0.0
    %1242 = vmatpush1.msra.mxu0 0.0
    %1243 = vmatprep.subr.mxu0 0.0
    %1244 = vmatpush1.msra.mxu0 0.0
    %1245 = vmatprep.subr.mxu0 0.0
    %1246 = vmatpush1.msra.mxu0 0.0
    %1247 = vmatprep.subr.mxu0 %v1230
    %1248 = vmatpush1.msra.mxu0 %v1229
    %1249 = vmatprep.subr.mxu0 %v1228
    %1250 = vmatpush1.msra.mxu0 %v1227
    %1251 = vmatprep.subr.mxu0 %v1226
    %1252 = vmatpush1.msra.mxu0 %v1225
    %1253 = vmatprep.subr.mxu0 %v1224
    %1254 = vmatpush1.msra.mxu0 %v1223
    %1255 = vmatprep.subr.mxu0 %v1222
    %1256 = vmatpush1.msra.mxu0 %v1221
    %1257 = vmatprep.subr.mxu0 %v1220
    %1258 = vmatpush1.msra.mxu0 %v1219
    %1259 = vmatprep.subr.mxu0 %v1218
    %1260 = vmatpush1.msra.mxu0 %v1217
    %1261 = vmatprep.subr.mxu0 %v1216
    %1262 = vmatpush1.msra.mxu0 %v1215
    %1263 = vmatprep.subr.mxu0 0.0
    %1264 = vmatpush2.msra.mxu0 0.0
    %1265 = vmatprep.subr.mxu0 0.0
    %1266 = vmatpush2.msra.mxu0 0.0
    %1267 = vmatprep.subr.mxu0 0.0
    %1268 = vmatpush2.msra.mxu0 0.0
    %1269 = vmatprep.subr.mxu0 0.0
    %1270 = vmatpush2.msra.mxu0 0.0
    %1271 = vmatprep.subr.mxu0 0.0
    %1272 = vmatpush2.msra.mxu0 0.0
    %1273 = vmatprep.subr.mxu0 0.0
    %1274 = vmatpush2.msra.mxu0 0.0
    %1275 = vmatprep.subr.mxu0 0.0
    %1276 = vmatpush2.msra.mxu0 0.0
    %1277 = vmatprep.subr.mxu0 0.0
    %1278 = vmatpush2.msra.mxu0 0.0
    %1279 = vmatprep.subr.mxu0 0.0
    %1280 = vmatpush2.msra.mxu0 0.0
    %1281 = vmatprep.subr.mxu0 0.0
    %1282 = vmatpush2.msra.mxu0 0.0
    %1283 = vmatprep.subr.mxu0 0.0
    %1284 = vmatpush2.msra.mxu0 0.0
    %1285 = vmatprep.subr.mxu0 0.0
    %1286 = vmatpush2.msra.mxu0 0.0
    %1287 = vmatprep.subr.mxu0 0.0
    %1288 = vmatpush2.msra.mxu0 0.0
    %1289 = vmatprep.subr.mxu0 0.0
    %1290 = vmatpush2.msra.mxu0 0.0
    %1291 = vmatprep.subr.mxu0 0.0
    %1292 = vmatpush2.msra.mxu0 0.0
    %1293 = vmatprep.subr.mxu0 0.0
    %1294 = vmatpush2.msra.mxu0 0.0
    %1295 = vmatprep.mubr.f32.mxu0 0.0
    %1296 = vmatmul.mubr.f32.gmra.mxu0 %v197
    %v1297 = vpop.f32.mrf.mxu0
    %v1298 = vadd.f32 0.0, %v1297
    %v1299 = vpop.f32.mrf.mxu0
    %v1300 = vadd.f32 0.0, %v1299
    %1301 = vdwg.mxu0
    %v1302 = vmul.f32 %v1298, 0.015625
    %v1303 = vmul.f32 %v1300, 0.015625
    %v1304 = vmul.f32 %v1213, %v1213
    %v1305 = vmul.f32 %v1214, %v1214
    %v1306 = vsub.f32 %v1302, %v1304
    %v1307 = vsub.f32 %v1303, %v1305
    %v1308 = vmax.f32 %v1306, 0.0
    %v1309 = vmax.f32 %v1307, 0.0
    %v1310 = vadd.f32 %v1308, 1e-05
    %v1311 = vadd.f32 %v1309, 1e-05
    %v1312 = vrsqrt.pop %v1310
    %v1313 = vrsqrt.pop %v1311
    %v1316 = vcombine.low %v1312, %v1313
    %v1318 = vunpack.c.l.s4 1966171168
    %v1319 = vunpack.c.0.s8 %v1318
    %v1320 = vlaneseq
    %v1321 = vshrl.u32 %v1320, 7
    %v1322 = vsub.s32 %v1319, %v1321
    %v1323 = vrot.slane %v1316, %v1322
    %v1325 = vunpack.c.l.s4 1966171168
    %v1326 = vunpack.c.0.s8 %v1325
    %v1327 = vlaneseq
    %v1328 = vshrl.u32 %v1327, 7
    %v1329 = vsub.s32 %v1326, %v1328
    %v1330 = vrot.slane %v1323, %v1329
    %v1332 = vmul.f32 %v1139, %v1330
    %v1334 = vlaneseq
    %v1335 = vshrl.u32 %v1334, 7
    %v1336 = vsub.s32 0, %v1335
    %v1337 = vrot.slane %v1332, %v1336
    %v1338 = vlaneseq
    %v1339 = vshrl.u32 %v1338, 7
    %v1340 = vsub.s32 1, %v1339
    %v1341 = vrot.slane %v1332, %v1340
    %v1344 = vmul.f32 %v1213, %v1337
    %v1345 = vmul.f32 %v1214, %v1341
    %v1348 = vcombine.low %v1344, %v1345
    %v1350 = vunpack.c.l.s4 1966171168
    %v1351 = vunpack.c.0.s8 %v1350
    %v1352 = vlaneseq
    %v1353 = vshrl.u32 %v1352, 7
    %v1354 = vsub.s32 %v1351, %v1353
    %v1355 = vrot.slane %v1348, %v1354
    %v1357 = vunpack.c.l.s4 1966171168
    %v1358 = vunpack.c.0.s8 %v1357
    %v1359 = vlaneseq
    %v1360 = vshrl.u32 %v1359, 7
    %v1361 = vsub.s32 %v1358, %v1360
    %v1362 = vrot.slane %v1355, %v1361
    %v1364 = vsub.f32 %v1141, %v1362
    %v1365 = vmul.f32 %v1092, %v1337
    %v1366 = vmul.f32 %v1094, %v1341
    %v1367 = vmul.f32 %v1098, %v1337
    %v1368 = vmul.f32 %v1100, %v1341
    %v1369 = vmul.f32 %v1104, %v1337
    %v1370 = vmul.f32 %v1106, %v1341
    %v1371 = vmul.f32 %v1110, %v1337
    %v1372 = vmul.f32 %v1112, %v1341
    %v1373 = vmul.f32 %v1116, %v1337
    %v1374 = vmul.f32 %v1118, %v1341
    %v1375 = vmul.f32 %v1122, %v1337
    %v1376 = vmul.f32 %v1124, %v1341
    %v1377 = vmul.f32 %v1128, %v1337
    %v1378 = vmul.f32 %v1130, %v1341
    %v1379 = vmul.f32 %v1134, %v1337
    %v1380 = vmul.f32 %v1136, %v1341
    %v1382 = vlaneseq
    %v1383 = vshrl.u32 %v1382, 7
    %v1384 = vsub.s32 0, %v1383
    %v1385 = vrot.slane %v1364, %v1384
    %v1386 = vlaneseq
    %v1387 = vshrl.u32 %v1386, 7
    %v1388 = vsub.s32 1, %v1387
    %v1389 = vrot.slane %v1364, %v1388
    %v1392 = vadd.f32 %v1365, %v1385
    %v1393 = vadd.f32 %v1366, %v1389
    %v1394 = vadd.f32 %v1367, %v1385
    %v1395 = vadd.f32 %v1368, %v1389
    %v1396 = vadd.f32 %v1369, %v1385
    %v1397 = vadd.f32 %v1370, %v1389
    %v1398 = vadd.f32 %v1371, %v1385
    %v1399 = vadd.f32 %v1372, %v1389
    %v1400 = vadd.f32 %v1373, %v1385
    %v1401 = vadd.f32 %v1374, %v1389
    %v1402 = vadd.f32 %v1375, %v1385
    %v1403 = vadd.f32 %v1376, %v1389
    %v1404 = vadd.f32 %v1377, %v1385
    %v1405 = vadd.f32 %v1378, %v1389
    %v1406 = vadd.f32 %v1379, %v1385
    %v1407 = vadd.f32 %v1380, %v1389
    %v1408 = vadd.f32 %v1392, %v944
    %v1409 = vadd.f32 %v1393, %v945
    %v1410 = vadd.f32 %v1394, %v946
    %v1411 = vadd.f32 %v1395, %v947
    %v1412 = vadd.f32 %v1396, %v948
    %v1413 = vadd.f32 %v1397, %v949
    %v1414 = vadd.f32 %v1398, %v950
    %v1415 = vadd.f32 %v1399, %v951
    %v1416 = vadd.f32 %v1400, %v952
    %v1417 = vadd.f32 %v1401, %v953
    %v1418 = vadd.f32 %v1402, %v954
    %v1419 = vadd.f32 %v1403, %v955
    %v1420 = vadd.f32 %v1404, %v956
    %v1421 = vadd.f32 %v1405, %v957
    %v1422 = vadd.f32 %v1406, %v958
    %v1423 = vadd.f32 %v1407, %v959
    %v1424 = vmax.f32 %v1408, 0.0
    %v1425 = vmax.f32 %v1409, 0.0
    %v1426 = vmax.f32 %v1410, 0.0
    %v1427 = vmax.f32 %v1411, 0.0
    %v1428 = vmax.f32 %v1412, 0.0
    %v1429 = vmax.f32 %v1413, 0.0
    %v1430 = vmax.f32 %v1414, 0.0
    %v1431 = vmax.f32 %v1415, 0.0
    %v1432 = vmax.f32 %v1416, 0.0
    %v1433 = vmax.f32 %v1417, 0.0
    %v1434 = vmax.f32 %v1418, 0.0
    %v1435 = vmax.f32 %v1419, 0.0
    %v1436 = vmax.f32 %v1420, 0.0
    %v1437 = vmax.f32 %v1421, 0.0
    %v1438 = vmax.f32 %v1422, 0.0
    %v1439 = vmax.f32 %v1423, 0.0
    %s1440 = scalar_lea.vmem [#allocation2], 1024
    %v1441 = vld [vmem:[%s1440] sm:$0xff]
    %v1442 = vld [vmem:[%s1440 + $0x8] sm:$0xff]
    %v1443 = vld [vmem:[%s1440 + $0x10] sm:$0xff]
    %v1444 = vld [vmem:[%s1440 + $0x18] sm:$0xff]
    %v1445 = vld [vmem:[%s1440 + $0x20] sm:$0xff]
    %v1446 = vld [vmem:[%s1440 + $0x28] sm:$0xff]
    %v1447 = vld [vmem:[%s1440 + $0x30] sm:$0xff]
    %v1448 = vld [vmem:[%s1440 + $0x38] sm:$0xff]
    %v1449 = vld [vmem:[%s1440 + $0x40] sm:$0xff]
    %v1450 = vld [vmem:[%s1440 + $0x48] sm:$0xff]
    %v1451 = vld [vmem:[%s1440 + $0x50] sm:$0xff]
    %v1452 = vld [vmem:[%s1440 + $0x58] sm:$0xff]
    %v1453 = vld [vmem:[%s1440 + $0x60] sm:$0xff]
    %v1454 = vld [vmem:[%s1440 + $0x68] sm:$0xff]
    %v1455 = vld [vmem:[%s1440 + $0x70] sm:$0xff]
    %v1456 = vld [vmem:[%s1440 + $0x78] sm:$0xff]
    %v1457 = vld [vmem:[%s1440 + $0x80] sm:$0xff]
    %v1458 = vld [vmem:[%s1440 + $0x88] sm:$0xff]
    %v1459 = vld [vmem:[%s1440 + $0x90] sm:$0xff]
    %v1460 = vld [vmem:[%s1440 + $0x98] sm:$0xff]
    %v1461 = vld [vmem:[%s1440 + $0xa0] sm:$0xff]
    %v1462 = vld [vmem:[%s1440 + $0xa8] sm:$0xff]
    %v1463 = vld [vmem:[%s1440 + $0xb0] sm:$0xff]
    %v1464 = vld [vmem:[%s1440 + $0xb8] sm:$0xff]
    %v1465 = vld [vmem:[%s1440 + $0xc0] sm:$0xff]
    %v1466 = vld [vmem:[%s1440 + $0xc8] sm:$0xff]
    %v1467 = vld [vmem:[%s1440 + $0xd0] sm:$0xff]
    %v1468 = vld [vmem:[%s1440 + $0xd8] sm:$0xff]
    %v1469 = vld [vmem:[%s1440 + $0xe0] sm:$0xff]
    %v1470 = vld [vmem:[%s1440 + $0xe8] sm:$0xff]
    %v1471 = vld [vmem:[%s1440 + $0xf0] sm:$0xff]
    %v1472 = vld [vmem:[%s1440 + $0xf8] sm:$0xff]
    %v1473 = vld [vmem:[%s1440 + $0x100] sm:$0xff]
    %v1474 = vld [vmem:[%s1440 + $0x108] sm:$0xff]
    %v1475 = vld [vmem:[%s1440 + $0x110] sm:$0xff]
    %v1476 = vld [vmem:[%s1440 + $0x118] sm:$0xff]
    %v1477 = vld [vmem:[%s1440 + $0x120] sm:$0xff]
    %v1478 = vld [vmem:[%s1440 + $0x128] sm:$0xff]
    %v1479 = vld [vmem:[%s1440 + $0x130] sm:$0xff]
    %v1480 = vld [vmem:[%s1440 + $0x138] sm:$0xff]
    %v1481 = vld [vmem:[%s1440 + $0x140] sm:$0xff]
    %v1482 = vld [vmem:[%s1440 + $0x148] sm:$0xff]
    %v1483 = vld [vmem:[%s1440 + $0x150] sm:$0xff]
    %v1484 = vld [vmem:[%s1440 + $0x158] sm:$0xff]
    %v1485 = vld [vmem:[%s1440 + $0x160] sm:$0xff]
    %v1486 = vld [vmem:[%s1440 + $0x168] sm:$0xff]
    %v1487 = vld [vmem:[%s1440 + $0x170] sm:$0xff]
    %v1488 = vld [vmem:[%s1440 + $0x178] sm:$0xff]
    %v1489 = vld [vmem:[%s1440 + $0x180] sm:$0xff]
    %v1490 = vld [vmem:[%s1440 + $0x188] sm:$0xff]
    %v1491 = vld [vmem:[%s1440 + $0x190] sm:$0xff]
    %v1492 = vld [vmem:[%s1440 + $0x198] sm:$0xff]
    %v1493 = vld [vmem:[%s1440 + $0x1a0] sm:$0xff]
    %v1494 = vld [vmem:[%s1440 + $0x1a8] sm:$0xff]
    %v1495 = vld [vmem:[%s1440 + $0x1b0] sm:$0xff]
    %v1496 = vld [vmem:[%s1440 + $0x1b8] sm:$0xff]
    %v1497 = vld [vmem:[%s1440 + $0x1c0] sm:$0xff]
    %v1498 = vld [vmem:[%s1440 + $0x1c8] sm:$0xff]
    %v1499 = vld [vmem:[%s1440 + $0x1d0] sm:$0xff]
    %v1500 = vld [vmem:[%s1440 + $0x1d8] sm:$0xff]
    %v1501 = vld [vmem:[%s1440 + $0x1e0] sm:$0xff]
    %v1502 = vld [vmem:[%s1440 + $0x1e8] sm:$0xff]
    %v1503 = vld [vmem:[%s1440 + $0x1f0] sm:$0xff]
    %v1504 = vld [vmem:[%s1440 + $0x1f8] sm:$0xff]
    %1505 = vmatprep.subr.mxu0 %v1472
    %1506 = vmatpush1.msra.mxu0 %v1471
    %1507 = vmatprep.subr.mxu0 %v1470
    %1508 = vmatpush1.msra.mxu0 %v1469
    %1509 = vmatprep.subr.mxu0 %v1468
    %1510 = vmatpush1.msra.mxu0 %v1467
    %1511 = vmatprep.subr.mxu0 %v1466
    %1512 = vmatpush1.msra.mxu0 %v1465
    %1513 = vmatprep.subr.mxu0 %v1464
    %1514 = vmatpush1.msra.mxu0 %v1463
    %1515 = vmatprep.subr.mxu0 %v1462
    %1516 = vmatpush1.msra.mxu0 %v1461
    %1517 = vmatprep.subr.mxu0 %v1460
    %1518 = vmatpush1.msra.mxu0 %v1459
    %1519 = vmatprep.subr.mxu0 %v1458
    %1520 = vmatpush1.msra.mxu0 %v1457
    %1521 = vmatprep.subr.mxu0 %v1456
    %1522 = vmatpush1.msra.mxu0 %v1455
    %1523 = vmatprep.subr.mxu0 %v1454
    %1524 = vmatpush1.msra.mxu0 %v1453
    %1525 = vmatprep.subr.mxu0 %v1452
    %1526 = vmatpush1.msra.mxu0 %v1451
    %1527 = vmatprep.subr.mxu0 %v1450
    %1528 = vmatpush1.msra.mxu0 %v1449
    %1529 = vmatprep.subr.mxu0 %v1448
    %1530 = vmatpush1.msra.mxu0 %v1447
    %1531 = vmatprep.subr.mxu0 %v1446
    %1532 = vmatpush1.msra.mxu0 %v1445
    %1533 = vmatprep.subr.mxu0 %v1444
    %1534 = vmatpush1.msra.mxu0 %v1443
    %1535 = vmatprep.subr.mxu0 %v1442
    %1536 = vmatpush1.msra.mxu0 %v1441
    %1537 = vmatprep.subr.mxu0 %v1504
    %1538 = vmatpush2.msra.mxu0 %v1503
    %1539 = vmatprep.subr.mxu0 %v1502
    %1540 = vmatpush2.msra.mxu0 %v1501
    %1541 = vmatprep.subr.mxu0 %v1500
    %1542 = vmatpush2.msra.mxu0 %v1499
    %1543 = vmatprep.subr.mxu0 %v1498
    %1544 = vmatpush2.msra.mxu0 %v1497
    %1545 = vmatprep.subr.mxu0 %v1496
    %1546 = vmatpush2.msra.mxu0 %v1495
    %1547 = vmatprep.subr.mxu0 %v1494
    %1548 = vmatpush2.msra.mxu0 %v1493
    %1549 = vmatprep.subr.mxu0 %v1492
    %1550 = vmatpush2.msra.mxu0 %v1491
    %1551 = vmatprep.subr.mxu0 %v1490
    %1552 = vmatpush2.msra.mxu0 %v1489
    %1553 = vmatprep.subr.mxu0 %v1488
    %1554 = vmatpush2.msra.mxu0 %v1487
    %1555 = vmatprep.subr.mxu0 %v1486
    %1556 = vmatpush2.msra.mxu0 %v1485
    %1557 = vmatprep.subr.mxu0 %v1484
    %1558 = vmatpush2.msra.mxu0 %v1483
    %1559 = vmatprep.subr.mxu0 %v1482
    %1560 = vmatpush2.msra.mxu0 %v1481
    %1561 = vmatprep.subr.mxu0 %v1480
    %1562 = vmatpush2.msra.mxu0 %v1479
    %1563 = vmatprep.subr.mxu0 %v1478
    %1564 = vmatpush2.msra.mxu0 %v1477
    %1565 = vmatprep.subr.mxu0 %v1476
    %1566 = vmatpush2.msra.mxu0 %v1475
    %1567 = vmatprep.subr.mxu0 %v1474
    %1568 = vmatpush2.msra.mxu0 %v1473
    %1569 = vmatprep.mubr.f32.mxu0 %v1425
    %1570 = vmatmul.mubr.f32.gmra.mxu0 %v1424
    %v1571 = vpop.f32.mrf.mxu0
    %v1572 = vadd.f32 0.0, %v1571
    %v1573 = vpop.f32.mrf.mxu0
    %v1574 = vadd.f32 0.0, %v1573
    %1575 = vmatprep.mubr.f32.mxu0 %v1427
    %1576 = vmatmul.mubr.f32.gmra.mxu0 %v1426
    %v1577 = vpop.f32.mrf.mxu0
    %v1578 = vadd.f32 0.0, %v1577
    %v1579 = vpop.f32.mrf.mxu0
    %v1580 = vadd.f32 0.0, %v1579
    %1581 = vmatprep.mubr.f32.mxu0 %v1429
    %1582 = vmatmul.mubr.f32.gmra.mxu0 %v1428
    %v1583 = vpop.f32.mrf.mxu0
    %v1584 = vadd.f32 0.0, %v1583
    %v1585 = vpop.f32.mrf.mxu0
    %v1586 = vadd.f32 0.0, %v1585
    %1587 = vmatprep.mubr.f32.mxu0 %v1431
    %1588 = vmatmul.mubr.f32.gmra.mxu0 %v1430
    %v1589 = vpop.f32.mrf.mxu0
    %v1590 = vadd.f32 0.0, %v1589
    %v1591 = vpop.f32.mrf.mxu0
    %v1592 = vadd.f32 0.0, %v1591
    %1593 = vmatprep.mubr.f32.mxu0 %v1433
    %1594 = vmatmul.mubr.f32.gmra.mxu0 %v1432
    %v1595 = vpop.f32.mrf.mxu0
    %v1596 = vadd.f32 0.0, %v1595
    %v1597 = vpop.f32.mrf.mxu0
    %v1598 = vadd.f32 0.0, %v1597
    %1599 = vmatprep.mubr.f32.mxu0 %v1435
    %1600 = vmatmul.mubr.f32.gmra.mxu0 %v1434
    %v1601 = vpop.f32.mrf.mxu0
    %v1602 = vadd.f32 0.0, %v1601
    %v1603 = vpop.f32.mrf.mxu0
    %v1604 = vadd.f32 0.0, %v1603
    %1605 = vmatprep.mubr.f32.mxu0 %v1437
    %1606 = vmatmul.mubr.f32.gmra.mxu0 %v1436
    %v1607 = vpop.f32.mrf.mxu0
    %v1608 = vadd.f32 0.0, %v1607
    %v1609 = vpop.f32.mrf.mxu0
    %v1610 = vadd.f32 0.0, %v1609
    %1611 = vmatprep.mubr.f32.mxu0 %v1439
    %1612 = vmatmul.mubr.f32.gmra.mxu0 %v1438
    %v1613 = vpop.f32.mrf.mxu0
    %v1614 = vadd.f32 0.0, %v1613
    %v1615 = vpop.f32.mrf.mxu0
    %v1616 = vadd.f32 0.0, %v1615
    %1617 = vdwg.mxu0
    %s1618 = scalar_lea.vmem %s5, 6
    %v1619 = vld [vmem:[%s1618] ss:$8 sm:$0x3]
    %s1620 = scalar_lea.vmem %s5, 7
    %v1621 = vld [vmem:[%s1620] ss:$8 sm:$0x3]
    %1622 = vmatprep.subr.mxu0 0.0
    %1623 = vmatpush1.msra.mxu0 0.0
    %1624 = vmatprep.subr.mxu0 0.0
    %1625 = vmatpush1.msra.mxu0 0.0
    %1626 = vmatprep.subr.mxu0 0.0
    %1627 = vmatpush1.msra.mxu0 0.0
    %1628 = vmatprep.subr.mxu0 0.0
    %1629 = vmatpush1.msra.mxu0 0.0
    %1630 = vmatprep.subr.mxu0 0.0
    %1631 = vmatpush1.msra.mxu0 0.0
    %1632 = vmatprep.subr.mxu0 0.0
    %1633 = vmatpush1.msra.mxu0 0.0
    %1634 = vmatprep.subr.mxu0 0.0
    %1635 = vmatpush1.msra.mxu0 0.0
    %1636 = vmatprep.subr.mxu0 0.0
    %1637 = vmatpush1.msra.mxu0 0.0
    %1638 = vmatprep.subr.mxu0 %v1616
    %1639 = vmatpush1.msra.mxu0 %v1614
    %1640 = vmatprep.subr.mxu0 %v1610
    %1641 = vmatpush1.msra.mxu0 %v1608
    %1642 = vmatprep.subr.mxu0 %v1604
    %1643 = vmatpush1.msra.mxu0 %v1602
    %1644 = vmatprep.subr.mxu0 %v1598
    %1645 = vmatpush1.msra.mxu0 %v1596
    %1646 = vmatprep.subr.mxu0 %v1592
    %1647 = vmatpush1.msra.mxu0 %v1590
    %1648 = vmatprep.subr.mxu0 %v1586
    %1649 = vmatpush1.msra.mxu0 %v1584
    %1650 = vmatprep.subr.mxu0 %v1580
    %1651 = vmatpush1.msra.mxu0 %v1578
    %1652 = vmatprep.subr.mxu0 %v1574
    %1653 = vmatpush1.msra.mxu0 %v1572
    %1654 = vmatprep.subr.mxu0 0.0
    %1655 = vmatpush2.msra.mxu0 0.0
    %1656 = vmatprep.subr.mxu0 0.0
    %1657 = vmatpush2.msra.mxu0 0.0
    %1658 = vmatprep.subr.mxu0 0.0
    %1659 = vmatpush2.msra.mxu0 0.0
    %1660 = vmatprep.subr.mxu0 0.0
    %1661 = vmatpush2.msra.mxu0 0.0
    %1662 = vmatprep.subr.mxu0 0.0
    %1663 = vmatpush2.msra.mxu0 0.0
    %1664 = vmatprep.subr.mxu0 0.0
    %1665 = vmatpush2.msra.mxu0 0.0
    %1666 = vmatprep.subr.mxu0 0.0
    %1667 = vmatpush2.msra.mxu0 0.0
    %1668 = vmatprep.subr.mxu0 0.0
    %1669 = vmatpush2.msra.mxu0 0.0
    %1670 = vmatprep.subr.mxu0 0.0
    %1671 = vmatpush2.msra.mxu0 0.0
    %1672 = vmatprep.subr.mxu0 0.0
    %1673 = vmatpush2.msra.mxu0 0.0
    %1674 = vmatprep.subr.mxu0 0.0
    %1675 = vmatpush2.msra.mxu0 0.0
    %1676 = vmatprep.subr.mxu0 0.0
    %1677 = vmatpush2.msra.mxu0 0.0
    %1678 = vmatprep.subr.mxu0 0.0
    %1679 = vmatpush2.msra.mxu0 0.0
    %1680 = vmatprep.subr.mxu0 0.0
    %1681 = vmatpush2.msra.mxu0 0.0
    %1682 = vmatprep.subr.mxu0 0.0
    %1683 = vmatpush2.msra.mxu0 0.0
    %1684 = vmatprep.subr.mxu0 0.0
    %1685 = vmatpush2.msra.mxu0 0.0
    %1686 = vmatprep.mubr.f32.mxu0 0.0
    %1687 = vmatmul.mubr.f32.gmra.mxu0 %v197
    %v1688 = vpop.f32.mrf.mxu0
    %v1689 = vadd.f32 0.0, %v1688
    %v1690 = vpop.f32.mrf.mxu0
    %v1691 = vadd.f32 0.0, %v1690
    %1692 = vdwg.mxu0
    %v1693 = vmul.f32 %v1689, 0.015625
    %v1694 = vmul.f32 %v1691, 0.015625
    %v1695 = vmul.f32 %v1572, %v1572
    %v1696 = vmul.f32 %v1574, %v1574
    %v1697 = vmul.f32 %v1578, %v1578
    %v1698 = vmul.f32 %v1580, %v1580
    %v1699 = vmul.f32 %v1584, %v1584
    %v1700 = vmul.f32 %v1586, %v1586
    %v1701 = vmul.f32 %v1590, %v1590
    %v1702 = vmul.f32 %v1592, %v1592
    %v1703 = vmul.f32 %v1596, %v1596
    %v1704 = vmul.f32 %v1598, %v1598
    %v1705 = vmul.f32 %v1602, %v1602
    %v1706 = vmul.f32 %v1604, %v1604
    %v1707 = vmul.f32 %v1608, %v1608
    %v1708 = vmul.f32 %v1610, %v1610
    %v1709 = vmul.f32 %v1614, %v1614
    %v1710 = vmul.f32 %v1616, %v1616
    %1711 = vmatprep.subr.mxu0 0.0
    %1712 = vmatpush1.msra.mxu0 0.0
    %1713 = vmatprep.subr.mxu0 0.0
    %1714 = vmatpush1.msra.mxu0 0.0
    %1715 = vmatprep.subr.mxu0 0.0
    %1716 = vmatpush1.msra.mxu0 0.0
    %1717 = vmatprep.subr.mxu0 0.0
    %1718 = vmatpush1.msra.mxu0 0.0
    %1719 = vmatprep.subr.mxu0 0.0
    %1720 = vmatpush1.msra.mxu0 0.0
    %1721 = vmatprep.subr.mxu0 0.0
    %1722 = vmatpush1.msra.mxu0 0.0
    %1723 = vmatprep.subr.mxu0 0.0
    %1724 = vmatpush1.msra.mxu0 0.0
    %1725 = vmatprep.subr.mxu0 0.0
    %1726 = vmatpush1.msra.mxu0 0.0
    %1727 = vmatprep.subr.mxu0 %v1710
    %1728 = vmatpush1.msra.mxu0 %v1709
    %1729 = vmatprep.subr.mxu0 %v1708
    %1730 = vmatpush1.msra.mxu0 %v1707
    %1731 = vmatprep.subr.mxu0 %v1706
    %1732 = vmatpush1.msra.mxu0 %v1705
    %1733 = vmatprep.subr.mxu0 %v1704
    %1734 = vmatpush1.msra.mxu0 %v1703
    %1735 = vmatprep.subr.mxu0 %v1702
    %1736 = vmatpush1.msra.mxu0 %v1701
    %1737 = vmatprep.subr.mxu0 %v1700
    %1738 = vmatpush1.msra.mxu0 %v1699
    %1739 = vmatprep.subr.mxu0 %v1698
    %1740 = vmatpush1.msra.mxu0 %v1697
    %1741 = vmatprep.subr.mxu0 %v1696
    %1742 = vmatpush1.msra.mxu0 %v1695
    %1743 = vmatprep.subr.mxu0 0.0
    %1744 = vmatpush2.msra.mxu0 0.0
    %1745 = vmatprep.subr.mxu0 0.0
    %1746 = vmatpush2.msra.mxu0 0.0
    %1747 = vmatprep.subr.mxu0 0.0
    %1748 = vmatpush2.msra.mxu0 0.0
    %1749 = vmatprep.subr.mxu0 0.0
    %1750 = vmatpush2.msra.mxu0 0.0
    %1751 = vmatprep.subr.mxu0 0.0
    %1752 = vmatpush2.msra.mxu0 0.0
    %1753 = vmatprep.subr.mxu0 0.0
    %1754 = vmatpush2.msra.mxu0 0.0
    %1755 = vmatprep.subr.mxu0 0.0
    %1756 = vmatpush2.msra.mxu0 0.0
    %1757 = vmatprep.subr.mxu0 0.0
    %1758 = vmatpush2.msra.mxu0 0.0
    %1759 = vmatprep.subr.mxu0 0.0
    %1760 = vmatpush2.msra.mxu0 0.0
    %1761 = vmatprep.subr.mxu0 0.0
    %1762 = vmatpush2.msra.mxu0 0.0
    %1763 = vmatprep.subr.mxu0 0.0
    %1764 = vmatpush2.msra.mxu0 0.0
    %1765 = vmatprep.subr.mxu0 0.0
    %1766 = vmatpush2.msra.mxu0 0.0
    %1767 = vmatprep.subr.mxu0 0.0
    %1768 = vmatpush2.msra.mxu0 0.0
    %1769 = vmatprep.subr.mxu0 0.0
    %1770 = vmatpush2.msra.mxu0 0.0
    %1771 = vmatprep.subr.mxu0 0.0
    %1772 = vmatpush2.msra.mxu0 0.0
    %1773 = vmatprep.subr.mxu0 0.0
    %1774 = vmatpush2.msra.mxu0 0.0
    %1775 = vmatprep.mubr.f32.mxu0 0.0
    %1776 = vmatmul.mubr.f32.gmra.mxu0 %v197
    %v1777 = vpop.f32.mrf.mxu0
    %v1778 = vadd.f32 0.0, %v1777
    %v1779 = vpop.f32.mrf.mxu0
    %v1780 = vadd.f32 0.0, %v1779
    %1781 = vdwg.mxu0
    %v1782 = vmul.f32 %v1778, 0.015625
    %v1783 = vmul.f32 %v1780, 0.015625
    %v1784 = vmul.f32 %v1693, %v1693
    %v1785 = vmul.f32 %v1694, %v1694
    %v1786 = vsub.f32 %v1782, %v1784
    %v1787 = vsub.f32 %v1783, %v1785
    %v1788 = vmax.f32 %v1786, 0.0
    %v1789 = vmax.f32 %v1787, 0.0
    %v1790 = vadd.f32 %v1788, 1e-05
    %v1791 = vadd.f32 %v1789, 1e-05
    %v1792 = vrsqrt.pop %v1790
    %v1793 = vrsqrt.pop %v1791
    %v1796 = vcombine.low %v1792, %v1793
    %v1798 = vunpack.c.l.s4 1966171168
    %v1799 = vunpack.c.0.s8 %v1798
    %v1800 = vlaneseq
    %v1801 = vshrl.u32 %v1800, 7
    %v1802 = vsub.s32 %v1799, %v1801
    %v1803 = vrot.slane %v1796, %v1802
    %v1805 = vunpack.c.l.s4 1966171168
    %v1806 = vunpack.c.0.s8 %v1805
    %v1807 = vlaneseq
    %v1808 = vshrl.u32 %v1807, 7
    %v1809 = vsub.s32 %v1806, %v1808
    %v1810 = vrot.slane %v1803, %v1809
    %v1812 = vmul.f32 %v1619, %v1810
    %v1814 = vlaneseq
    %v1815 = vshrl.u32 %v1814, 7
    %v1816 = vsub.s32 0, %v1815
    %v1817 = vrot.slane %v1812, %v1816
    %v1818 = vlaneseq
    %v1819 = vshrl.u32 %v1818, 7
    %v1820 = vsub.s32 1, %v1819
    %v1821 = vrot.slane %v1812, %v1820
    %v1824 = vmul.f32 %v1693, %v1817
    %v1825 = vmul.f32 %v1694, %v1821
    %v1828 = vcombine.low %v1824, %v1825
    %v1830 = vunpack.c.l.s4 1966171168
    %v1831 = vunpack.c.0.s8 %v1830
    %v1832 = vlaneseq
    %v1833 = vshrl.u32 %v1832, 7
    %v1834 = vsub.s32 %v1831, %v1833
    %v1835 = vrot.slane %v1828, %v1834
    %v1837 = vunpack.c.l.s4 1966171168
    %v1838 = vunpack.c.0.s8 %v1837
    %v1839 = vlaneseq
    %v1840 = vshrl.u32 %v1839, 7
    %v1841 = vsub.s32 %v1838, %v1840
    %v1842 = vrot.slane %v1835, %v1841
    %v1844 = vsub.f32 %v1621, %v1842
    %v1845 = vmul.f32 %v1572, %v1817
    %v1846 = vmul.f32 %v1574, %v1821
    %v1847 = vmul.f32 %v1578, %v1817
    %v1848 = vmul.f32 %v1580, %v1821
    %v1849 = vmul.f32 %v1584, %v1817
    %v1850 = vmul.f32 %v1586, %v1821
    %v1851 = vmul.f32 %v1590, %v1817
    %v1852 = vmul.f32 %v1592, %v1821
    %v1853 = vmul.f32 %v1596, %v1817
    %v1854 = vmul.f32 %v1598, %v1821
    %v1855 = vmul.f32 %v1602, %v1817
    %v1856 = vmul.f32 %v1604, %v1821
    %v1857 = vmul.f32 %v1608, %v1817
    %v1858 = vmul.f32 %v1610, %v1821
    %v1859 = vmul.f32 %v1614, %v1817
    %v1860 = vmul.f32 %v1616, %v1821
    %v1862 = vlaneseq
    %v1863 = vshrl.u32 %v1862, 7
    %v1864 = vsub.s32 0, %v1863
    %v1865 = vrot.slane %v1844, %v1864
    %v1866 = vlaneseq
    %v1867 = vshrl.u32 %v1866, 7
    %v1868 = vsub.s32 1, %v1867
    %v1869 = vrot.slane %v1844, %v1868
    %v1872 = vadd.f32 %v1845, %v1865
    %v1873 = vadd.f32 %v1846, %v1869
    %v1874 = vadd.f32 %v1847, %v1865
    %v1875 = vadd.f32 %v1848, %v1869
    %v1876 = vadd.f32 %v1849, %v1865
    %v1877 = vadd.f32 %v1850, %v1869
    %v1878 = vadd.f32 %v1851, %v1865
    %v1879 = vadd.f32 %v1852, %v1869
    %v1880 = vadd.f32 %v1853, %v1865
    %v1881 = vadd.f32 %v1854, %v1869
    %v1882 = vadd.f32 %v1855, %v1865
    %v1883 = vadd.f32 %v1856, %v1869
    %v1884 = vadd.f32 %v1857, %v1865
    %v1885 = vadd.f32 %v1858, %v1869
    %v1886 = vadd.f32 %v1859, %v1865
    %v1887 = vadd.f32 %v1860, %v1869
    %v1888 = vadd.f32 %v1872, %v1424
    %v1889 = vadd.f32 %v1873, %v1425
    %v1890 = vadd.f32 %v1874, %v1426
    %v1891 = vadd.f32 %v1875, %v1427
    %v1892 = vadd.f32 %v1876, %v1428
    %v1893 = vadd.f32 %v1877, %v1429
    %v1894 = vadd.f32 %v1878, %v1430
    %v1895 = vadd.f32 %v1879, %v1431
    %v1896 = vadd.f32 %v1880, %v1432
    %v1897 = vadd.f32 %v1881, %v1433
    %v1898 = vadd.f32 %v1882, %v1434
    %v1899 = vadd.f32 %v1883, %v1435
    %v1900 = vadd.f32 %v1884, %v1436
    %v1901 = vadd.f32 %v1885, %v1437
    %v1902 = vadd.f32 %v1886, %v1438
    %v1903 = vadd.f32 %v1887, %v1439
    %v1904 = vmax.f32 %v1888, 0.0
    %v1905 = vmax.f32 %v1889, 0.0
    %v1906 = vmax.f32 %v1890, 0.0
    %v1907 = vmax.f32 %v1891, 0.0
    %v1908 = vmax.f32 %v1892, 0.0
    %v1909 = vmax.f32 %v1893, 0.0
    %v1910 = vmax.f32 %v1894, 0.0
    %v1911 = vmax.f32 %v1895, 0.0
    %v1912 = vmax.f32 %v1896, 0.0
    %v1913 = vmax.f32 %v1897, 0.0
    %v1914 = vmax.f32 %v1898, 0.0
    %v1915 = vmax.f32 %v1899, 0.0
    %v1916 = vmax.f32 %v1900, 0.0
    %v1917 = vmax.f32 %v1901, 0.0
    %v1918 = vmax.f32 %v1902, 0.0
    %v1919 = vmax.f32 %v1903, 0.0
    %v1920 = vld [vmem:[%s3] sm:$0xff]
    %v1921 = vld [vmem:[%s3 + $0x8] sm:$0xff]
    %v1922 = vld [vmem:[%s3 + $0x10] sm:$0xff]
    %v1923 = vld [vmem:[%s3 + $0x18] sm:$0xff]
    %v1924 = vld [vmem:[%s3 + $0x20] sm:$0xff]
    %v1925 = vld [vmem:[%s3 + $0x28] sm:$0xff]
    %v1926 = vld [vmem:[%s3 + $0x30] sm:$0xff]
    %v1927 = vld [vmem:[%s3 + $0x38] sm:$0xff]
    %v1928 = vld [vmem:[%s3 + $0x40] sm:$0xff]
    %v1929 = vld [vmem:[%s3 + $0x48] sm:$0xff]
    %v1930 = vld [vmem:[%s3 + $0x50] sm:$0xff]
    %v1931 = vld [vmem:[%s3 + $0x58] sm:$0xff]
    %v1932 = vld [vmem:[%s3 + $0x60] sm:$0xff]
    %v1933 = vld [vmem:[%s3 + $0x68] sm:$0xff]
    %v1934 = vld [vmem:[%s3 + $0x70] sm:$0xff]
    %v1935 = vld [vmem:[%s3 + $0x78] sm:$0xff]
    %v1936 = vld [vmem:[%s3 + $0x80] sm:$0xff]
    %v1937 = vld [vmem:[%s3 + $0x88] sm:$0xff]
    %v1938 = vld [vmem:[%s3 + $0x90] sm:$0xff]
    %v1939 = vld [vmem:[%s3 + $0x98] sm:$0xff]
    %v1940 = vld [vmem:[%s3 + $0xa0] sm:$0xff]
    %v1941 = vld [vmem:[%s3 + $0xa8] sm:$0xff]
    %v1942 = vld [vmem:[%s3 + $0xb0] sm:$0xff]
    %v1943 = vld [vmem:[%s3 + $0xb8] sm:$0xff]
    %v1944 = vld [vmem:[%s3 + $0xc0] sm:$0xff]
    %v1945 = vld [vmem:[%s3 + $0xc8] sm:$0xff]
    %v1946 = vld [vmem:[%s3 + $0xd0] sm:$0xff]
    %v1947 = vld [vmem:[%s3 + $0xd8] sm:$0xff]
    %v1948 = vld [vmem:[%s3 + $0xe0] sm:$0xff]
    %v1949 = vld [vmem:[%s3 + $0xe8] sm:$0xff]
    %v1950 = vld [vmem:[%s3 + $0xf0] sm:$0xff]
    %v1951 = vld [vmem:[%s3 + $0xf8] sm:$0xff]
    %1952 = vmatprep.subr.mxu0 0.0
    %1953 = vmatpush1.msra.mxu0 %v1935
    %1954 = vmatprep.subr.mxu0 0.0
    %1955 = vmatpush1.msra.mxu0 %v1934
    %1956 = vmatprep.subr.mxu0 0.0
    %1957 = vmatpush1.msra.mxu0 %v1933
    %1958 = vmatprep.subr.mxu0 0.0
    %1959 = vmatpush1.msra.mxu0 %v1932
    %1960 = vmatprep.subr.mxu0 0.0
    %1961 = vmatpush1.msra.mxu0 %v1931
    %1962 = vmatprep.subr.mxu0 0.0
    %1963 = vmatpush1.msra.mxu0 %v1930
    %1964 = vmatprep.subr.mxu0 0.0
    %1965 = vmatpush1.msra.mxu0 %v1929
    %1966 = vmatprep.subr.mxu0 0.0
    %1967 = vmatpush1.msra.mxu0 %v1928
    %1968 = vmatprep.subr.mxu0 0.0
    %1969 = vmatpush1.msra.mxu0 %v1927
    %1970 = vmatprep.subr.mxu0 0.0
    %1971 = vmatpush1.msra.mxu0 %v1926
    %1972 = vmatprep.subr.mxu0 0.0
    %1973 = vmatpush1.msra.mxu0 %v1925
    %1974 = vmatprep.subr.mxu0 0.0
    %1975 = vmatpush1.msra.mxu0 %v1924
    %1976 = vmatprep.subr.mxu0 0.0
    %1977 = vmatpush1.msra.mxu0 %v1923
    %1978 = vmatprep.subr.mxu0 0.0
    %1979 = vmatpush1.msra.mxu0 %v1922
    %1980 = vmatprep.subr.mxu0 0.0
    %1981 = vmatpush1.msra.mxu0 %v1921
    %1982 = vmatprep.subr.mxu0 0.0
    %1983 = vmatpush1.msra.mxu0 %v1920
    %1984 = vmatprep.subr.mxu0 0.0
    %1985 = vmatpush2.msra.mxu0 %v1951
    %1986 = vmatprep.subr.mxu0 0.0
    %1987 = vmatpush2.msra.mxu0 %v1950
    %1988 = vmatprep.subr.mxu0 0.0
    %1989 = vmatpush2.msra.mxu0 %v1949
    %1990 = vmatprep.subr.mxu0 0.0
    %1991 = vmatpush2.msra.mxu0 %v1948
    %1992 = vmatprep.subr.mxu0 0.0
    %1993 = vmatpush2.msra.mxu0 %v1947
    %1994 = vmatprep.subr.mxu0 0.0
    %1995 = vmatpush2.msra.mxu0 %v1946
    %1996 = vmatprep.subr.mxu0 0.0
    %1997 = vmatpush2.msra.mxu0 %v1945
    %1998 = vmatprep.subr.mxu0 0.0
    %1999 = vmatpush2.msra.mxu0 %v1944
    %2000 = vmatprep.subr.mxu0 0.0
    %2001 = vmatpush2.msra.mxu0 %v1943
    %2002 = vmatprep.subr.mxu0 0.0
    %2003 = vmatpush2.msra.mxu0 %v1942
    %2004 = vmatprep.subr.mxu0 0.0
    %2005 = vmatpush2.msra.mxu0 %v1941
    %2006 = vmatprep.subr.mxu0 0.0
    %2007 = vmatpush2.msra.mxu0 %v1940
    %2008 = vmatprep.subr.mxu0 0.0
    %2009 = vmatpush2.msra.mxu0 %v1939
    %2010 = vmatprep.subr.mxu0 0.0
    %2011 = vmatpush2.msra.mxu0 %v1938
    %2012 = vmatprep.subr.mxu0 0.0
    %2013 = vmatpush2.msra.mxu0 %v1937
    %2014 = vmatprep.subr.mxu0 0.0
    %2015 = vmatpush2.msra.mxu0 %v1936
    %2016 = vmatprep.mubr.f32.mxu0 %v1905
    %2017 = vmatmul.mubr.f32.gmra.mxu0 %v1904
    %v2018 = vpop.f32.mrf.mxu0
    %v2019 = vadd.f32 0.0, %v2018
    %v2020 = vpop.f32.mrf.mxu0
    %2021 = vmatprep.mubr.f32.mxu0 %v1907
    %2022 = vmatmul.mubr.f32.gmra.mxu0 %v1906
    %v2023 = vpop.f32.mrf.mxu0
    %v2024 = vadd.f32 0.0, %v2023
    %v2025 = vpop.f32.mrf.mxu0
    %2026 = vmatprep.mubr.f32.mxu0 %v1909
    %2027 = vmatmul.mubr.f32.gmra.mxu0 %v1908
    %v2028 = vpop.f32.mrf.mxu0
    %v2029 = vadd.f32 0.0, %v2028
    %v2030 = vpop.f32.mrf.mxu0
    %2031 = vmatprep.mubr.f32.mxu0 %v1911
    %2032 = vmatmul.mubr.f32.gmra.mxu0 %v1910
    %v2033 = vpop.f32.mrf.mxu0
    %v2034 = vadd.f32 0.0, %v2033
    %v2035 = vpop.f32.mrf.mxu0
    %2036 = vmatprep.mubr.f32.mxu0 %v1913
    %2037 = vmatmul.mubr.f32.gmra.mxu0 %v1912
    %v2038 = vpop.f32.mrf.mxu0
    %v2039 = vadd.f32 0.0, %v2038
    %v2040 = vpop.f32.mrf.mxu0
    %2041 = vmatprep.mubr.f32.mxu0 %v1915
    %2042 = vmatmul.mubr.f32.gmra.mxu0 %v1914
    %v2043 = vpop.f32.mrf.mxu0
    %v2044 = vadd.f32 0.0, %v2043
    %v2045 = vpop.f32.mrf.mxu0
    %2046 = vmatprep.mubr.f32.mxu0 %v1917
    %2047 = vmatmul.mubr.f32.gmra.mxu0 %v1916
    %v2048 = vpop.f32.mrf.mxu0
    %v2049 = vadd.f32 0.0, %v2048
    %v2050 = vpop.f32.mrf.mxu0
    %2051 = vmatprep.mubr.f32.mxu0 %v1919
    %2052 = vmatmul.mubr.f32.gmra.mxu0 %v1918
    %v2053 = vpop.f32.mrf.mxu0
    %v2054 = vadd.f32 0.0, %v2053
    %v2055 = vpop.f32.mrf.mxu0
    %2056 = vdwg.mxu0
    %v2057 = vld [vmem:[%s5 + $0x10] ss:$0 sm:$0xff]
    %v2058 = vld [vmem:[%s5 + $0x11] ss:$0 sm:$0xff]
    %2059 = vmatprep.subr.mxu0 0.0
    %2060 = vmatpush1.msra.mxu0 0.0
    %2061 = vmatprep.subr.mxu0 0.0
    %2062 = vmatpush1.msra.mxu0 0.0
    %2063 = vmatprep.subr.mxu0 0.0
    %2064 = vmatpush1.msra.mxu0 0.0
    %2065 = vmatprep.subr.mxu0 0.0
    %2066 = vmatpush1.msra.mxu0 0.0
    %2067 = vmatprep.subr.mxu0 0.0
    %2068 = vmatpush1.msra.mxu0 0.0
    %2069 = vmatprep.subr.mxu0 0.0
    %2070 = vmatpush1.msra.mxu0 0.0
    %2071 = vmatprep.subr.mxu0 0.0
    %2072 = vmatpush1.msra.mxu0 0.0
    %2073 = vmatprep.subr.mxu0 0.0
    %2074 = vmatpush1.msra.mxu0 0.0
    %2075 = vmatprep.subr.mxu0 0.0
    %2076 = vmatpush1.msra.mxu0 %v2054
    %2077 = vmatprep.subr.mxu0 0.0
    %2078 = vmatpush1.msra.mxu0 %v2049
    %2079 = vmatprep.subr.mxu0 0.0
    %2080 = vmatpush1.msra.mxu0 %v2044
    %2081 = vmatprep.subr.mxu0 0.0
    %2082 = vmatpush1.msra.mxu0 %v2039
    %2083 = vmatprep.subr.mxu0 0.0
    %2084 = vmatpush1.msra.mxu0 %v2034
    %2085 = vmatprep.subr.mxu0 0.0
    %2086 = vmatpush1.msra.mxu0 %v2029
    %2087 = vmatprep.subr.mxu0 0.0
    %2088 = vmatpush1.msra.mxu0 %v2024
    %2089 = vmatprep.subr.mxu0 0.0
    %2090 = vmatpush1.msra.mxu0 %v2019
    %2091 = vmatprep.subr.mxu0 0.0
    %2092 = vmatpush2.msra.mxu0 0.0
    %2093 = vmatprep.subr.mxu0 0.0
    %2094 = vmatpush2.msra.mxu0 0.0
    %2095 = vmatprep.subr.mxu0 0.0
    %2096 = vmatpush2.msra.mxu0 0.0
    %2097 = vmatprep.subr.mxu0 0.0
    %2098 = vmatpush2.msra.mxu0 0.0
    %2099 = vmatprep.subr.mxu0 0.0
    %2100 = vmatpush2.msra.mxu0 0.0
    %2101 = vmatprep.subr.mxu0 0.0
    %2102 = vmatpush2.msra.mxu0 0.0
    %2103 = vmatprep.subr.mxu0 0.0
    %2104 = vmatpush2.msra.mxu0 0.0
    %2105 = vmatprep.subr.mxu0 0.0
    %2106 = vmatpush2.msra.mxu0 0.0
    %2107 = vmatprep.subr.mxu0 0.0
    %2108 = vmatpush2.msra.mxu0 0.0
    %2109 = vmatprep.subr.mxu0 0.0
    %2110 = vmatpush2.msra.mxu0 0.0
    %2111 = vmatprep.subr.mxu0 0.0
    %2112 = vmatpush2.msra.mxu0 0.0
    %2113 = vmatprep.subr.mxu0 0.0
    %2114 = vmatpush2.msra.mxu0 0.0
    %2115 = vmatprep.subr.mxu0 0.0
    %2116 = vmatpush2.msra.mxu0 0.0
    %2117 = vmatprep.subr.mxu0 0.0
    %2118 = vmatpush2.msra.mxu0 0.0
    %2119 = vmatprep.subr.mxu0 0.0
    %2120 = vmatpush2.msra.mxu0 0.0
    %2121 = vmatprep.subr.mxu0 0.0
    %2122 = vmatpush2.msra.mxu0 0.0
    %2123 = vmatprep.mubr.f32.mxu0 0.0
    %2124 = vmatmul.mubr.f32.gmra.mxu0 %v197
    %v2125 = vpop.f32.mrf.mxu0
    %v2126 = vadd.f32 0.0, %v2125
    %v2127 = vpop.f32.mrf.mxu0
    %2128 = vdwg.mxu0
    %v2129 = vmul.f32 %v2126, 0.015625
    %v2130 = vmul.f32 %v2019, %v2019
    %v2131 = vmul.f32 %v2024, %v2024
    %v2132 = vmul.f32 %v2029, %v2029
    %v2133 = vmul.f32 %v2034, %v2034
    %v2134 = vmul.f32 %v2039, %v2039
    %v2135 = vmul.f32 %v2044, %v2044
    %v2136 = vmul.f32 %v2049, %v2049
    %v2137 = vmul.f32 %v2054, %v2054
    %2138 = vmatprep.subr.mxu0 0.0
    %2139 = vmatpush1.msra.mxu0 0.0
    %2140 = vmatprep.subr.mxu0 0.0
    %2141 = vmatpush1.msra.mxu0 0.0
    %2142 = vmatprep.subr.mxu0 0.0
    %2143 = vmatpush1.msra.mxu0 0.0
    %2144 = vmatprep.subr.mxu0 0.0
    %2145 = vmatpush1.msra.mxu0 0.0
    %2146 = vmatprep.subr.mxu0 0.0
    %2147 = vmatpush1.msra.mxu0 0.0
    %2148 = vmatprep.subr.mxu0 0.0
    %2149 = vmatpush1.msra.mxu0 0.0
    %2150 = vmatprep.subr.mxu0 0.0
    %2151 = vmatpush1.msra.mxu0 0.0
    %2152 = vmatprep.subr.mxu0 0.0
    %2153 = vmatpush1.msra.mxu0 0.0
    %2154 = vmatprep.subr.mxu0 0.0
    %2155 = vmatpush1.msra.mxu0 %v2137
    %2156 = vmatprep.subr.mxu0 0.0
    %2157 = vmatpush1.msra.mxu0 %v2136
    %2158 = vmatprep.subr.mxu0 0.0
    %2159 = vmatpush1.msra.mxu0 %v2135
    %2160 = vmatprep.subr.mxu0 0.0
    %2161 = vmatpush1.msra.mxu0 %v2134
    %2162 = vmatprep.subr.mxu0 0.0
    %2163 = vmatpush1.msra.mxu0 %v2133
    %2164 = vmatprep.subr.mxu0 0.0
    %2165 = vmatpush1.msra.mxu0 %v2132
    %2166 = vmatprep.subr.mxu0 0.0
    %2167 = vmatpush1.msra.mxu0 %v2131
    %2168 = vmatprep.subr.mxu0 0.0
    %2169 = vmatpush1.msra.mxu0 %v2130
    %2170 = vmatprep.subr.mxu0 0.0
    %2171 = vmatpush2.msra.mxu0 0.0
    %2172 = vmatprep.subr.mxu0 0.0
    %2173 = vmatpush2.msra.mxu0 0.0
    %2174 = vmatprep.subr.mxu0 0.0
    %2175 = vmatpush2.msra.mxu0 0.0
    %2176 = vmatprep.subr.mxu0 0.0
    %2177 = vmatpush2.msra.mxu0 0.0
    %2178 = vmatprep.subr.mxu0 0.0
    %2179 = vmatpush2.msra.mxu0 0.0
    %2180 = vmatprep.subr.mxu0 0.0
    %2181 = vmatpush2.msra.mxu0 0.0
    %2182 = vmatprep.subr.mxu0 0.0
    %2183 = vmatpush2.msra.mxu0 0.0
    %2184 = vmatprep.subr.mxu0 0.0
    %2185 = vmatpush2.msra.mxu0 0.0
    %2186 = vmatprep.subr.mxu0 0.0
    %2187 = vmatpush2.msra.mxu0 0.0
    %2188 = vmatprep.subr.mxu0 0.0
    %2189 = vmatpush2.msra.mxu0 0.0
    %2190 = vmatprep.subr.mxu0 0.0
    %2191 = vmatpush2.msra.mxu0 0.0
    %2192 = vmatprep.subr.mxu0 0.0
    %2193 = vmatpush2.msra.mxu0 0.0
    %2194 = vmatprep.subr.mxu0 0.0
    %2195 = vmatpush2.msra.mxu0 0.0
    %2196 = vmatprep.subr.mxu0 0.0
    %2197 = vmatpush2.msra.mxu0 0.0
    %2198 = vmatprep.subr.mxu0 0.0
    %2199 = vmatpush2.msra.mxu0 0.0
    %2200 = vmatprep.subr.mxu0 0.0
    %2201 = vmatpush2.msra.mxu0 0.0
    %2202 = vmatprep.mubr.f32.mxu0 0.0
    %2203 = vmatmul.mubr.f32.gmra.mxu0 %v197
    %v2204 = vpop.f32.mrf.mxu0
    %v2205 = vadd.f32 0.0, %v2204
    %v2206 = vpop.f32.mrf.mxu0
    %2207 = vdwg.mxu0
    %v2208 = vmul.f32 %v2205, 0.015625
    %v2209 = vmul.f32 %v2129, %v2129
    %v2210 = vsub.f32 %v2208, %v2209
    %v2211 = vmax.f32 %v2210, 0.0
    %v2212 = vadd.f32 %v2211, 1e-05
    %v2213 = vrsqrt.pop %v2212
    %v2214 = vmul.f32 %v2057, %v2213
    %v2215 = vmul.f32 %v2129, %v2214
    %v2216 = vsub.f32 %v2058, %v2215
    %v2217 = vlaneseq
    %v2218 = vshrl.u32 %v2217, 7
    %v2219 = vsub.s32 0, %v2218
    %v2220 = vrot.slane %v2214, %v2219
    %v2221 = vmul.f32 %v2019, %v2220
    %v2222 = vmul.f32 %v2024, %v2220
    %v2223 = vmul.f32 %v2029, %v2220
    %v2224 = vmul.f32 %v2034, %v2220
    %v2225 = vmul.f32 %v2039, %v2220
    %v2226 = vmul.f32 %v2044, %v2220
    %v2227 = vmul.f32 %v2049, %v2220
    %v2228 = vmul.f32 %v2054, %v2220
    %v2229 = vlaneseq
    %v2230 = vshrl.u32 %v2229, 7
    %v2231 = vsub.s32 0, %v2230
    %v2232 = vrot.slane %v2216, %v2231
    %v2233 = vadd.f32 %v2221, %v2232
    %v2234 = vadd.f32 %v2222, %v2232
    %v2235 = vadd.f32 %v2223, %v2232
    %v2236 = vadd.f32 %v2224, %v2232
    %v2237 = vadd.f32 %v2225, %v2232
    %v2238 = vadd.f32 %v2226, %v2232
    %v2239 = vadd.f32 %v2227, %v2232
    %v2240 = vadd.f32 %v2228, %v2232
    %v2241 = vmax.f32 %v2233, 0.0
    %v2242 = vmax.f32 %v2234, 0.0
    %v2243 = vmax.f32 %v2235, 0.0
    %v2244 = vmax.f32 %v2236, 0.0
    %v2245 = vmax.f32 %v2237, 0.0
    %v2246 = vmax.f32 %v2238, 0.0
    %v2247 = vmax.f32 %v2239, 0.0
    %v2248 = vmax.f32 %v2240, 0.0
    %v2249 = vld [vmem:[%s4] sm:$0xff]
    %v2250 = vld [vmem:[%s4 + $0x8] sm:$0xff]
    %v2251 = vld [vmem:[%s4 + $0x10] sm:$0xff]
    %v2252 = vld [vmem:[%s4 + $0x18] sm:$0xff]
    %v2253 = vld [vmem:[%s5 + $0x12] ss:$0 sm:$0xff]
    %v2255 = vsel %vm54, %v2241, 0
    %v2258 = vsel %vm54, %v2242, 0
    %v2261 = vsel %vm54, %v2243, 0
    %v2264 = vsel %vm54, %v2244, 0
    %v2267 = vsel %vm54, %v2245, 0
    %v2270 = vsel %vm54, %v2246, 0
    %v2273 = vsel %vm54, %v2247, 0
    %v2276 = vsel %vm54, %v2248, 0
    %2278 = vmatprep.subr.mxu0 0.0
    %2279 = vmatpush1.msra.mxu0 0.0
    %2280 = vmatprep.subr.mxu0 0.0
    %2281 = vmatpush1.msra.mxu0 0.0
    %2282 = vmatprep.subr.mxu0 0.0
    %2283 = vmatpush1.msra.mxu0 0.0
    %2284 = vmatprep.subr.mxu0 0.0
    %2285 = vmatpush1.msra.mxu0 0.0
    %2286 = vmatprep.subr.mxu0 0.0
    %2287 = vmatpush1.msra.mxu0 0.0
    %2288 = vmatprep.subr.mxu0 0.0
    %2289 = vmatpush1.msra.mxu0 0.0
    %2290 = vmatprep.subr.mxu0 0.0
    %2291 = vmatpush1.msra.mxu0 0.0
    %2292 = vmatprep.subr.mxu0 0.0
    %2293 = vmatpush1.msra.mxu0 0.0
    %2294 = vmatprep.subr.mxu0 0.0
    %2295 = vmatpush1.msra.mxu0 0.0
    %2296 = vmatprep.subr.mxu0 0.0
    %2297 = vmatpush1.msra.mxu0 0.0
    %2298 = vmatprep.subr.mxu0 0.0
    %2299 = vmatpush1.msra.mxu0 0.0
    %2300 = vmatprep.subr.mxu0 0.0
    %2301 = vmatpush1.msra.mxu0 0.0
    %2302 = vmatprep.subr.mxu0 0.0
    %2303 = vmatpush1.msra.mxu0 %v2252
    %2304 = vmatprep.subr.mxu0 0.0
    %2305 = vmatpush1.msra.mxu0 %v2251
    %2306 = vmatprep.subr.mxu0 0.0
    %2307 = vmatpush1.msra.mxu0 %v2250
    %2308 = vmatprep.subr.mxu0 0.0
    %2309 = vmatpush1.msra.mxu0 %v2249
    %2310 = vmatprep.subr.mxu0 0.0
    %2311 = vmatpush2.msra.mxu0 0.0
    %2312 = vmatprep.subr.mxu0 0.0
    %2313 = vmatpush2.msra.mxu0 0.0
    %2314 = vmatprep.subr.mxu0 0.0
    %2315 = vmatpush2.msra.mxu0 0.0
    %2316 = vmatprep.subr.mxu0 0.0
    %2317 = vmatpush2.msra.mxu0 0.0
    %2318 = vmatprep.subr.mxu0 0.0
    %2319 = vmatpush2.msra.mxu0 0.0
    %2320 = vmatprep.subr.mxu0 0.0
    %2321 = vmatpush2.msra.mxu0 0.0
    %2322 = vmatprep.subr.mxu0 0.0
    %2323 = vmatpush2.msra.mxu0 0.0
    %2324 = vmatprep.subr.mxu0 0.0
    %2325 = vmatpush2.msra.mxu0 0.0
    %2326 = vmatprep.subr.mxu0 0.0
    %2327 = vmatpush2.msra.mxu0 0.0
    %2328 = vmatprep.subr.mxu0 0.0
    %2329 = vmatpush2.msra.mxu0 0.0
    %2330 = vmatprep.subr.mxu0 0.0
    %2331 = vmatpush2.msra.mxu0 0.0
    %2332 = vmatprep.subr.mxu0 0.0
    %2333 = vmatpush2.msra.mxu0 0.0
    %2334 = vmatprep.subr.mxu0 0.0
    %2335 = vmatpush2.msra.mxu0 0.0
    %2336 = vmatprep.subr.mxu0 0.0
    %2337 = vmatpush2.msra.mxu0 0.0
    %2338 = vmatprep.subr.mxu0 0.0
    %2339 = vmatpush2.msra.mxu0 0.0
    %2340 = vmatprep.subr.mxu0 0.0
    %2341 = vmatpush2.msra.mxu0 0.0
    %2342 = vmatprep.mubr.f32.mxu0 0.0
    %2343 = vmatmul.mubr.f32.gmra.mxu0 %v2255
    %v2344 = vpop.f32.mrf.mxu0
    %v2345 = vadd.f32 %v2253, %v2344
    %v2346 = vpop.f32.mrf.mxu0
    %2347 = vmatprep.mubr.f32.mxu0 0.0
    %2348 = vmatmul.mubr.f32.gmra.mxu0 %v2258
    %v2349 = vpop.f32.mrf.mxu0
    %v2350 = vadd.f32 %v2253, %v2349
    %v2351 = vpop.f32.mrf.mxu0
    %2352 = vmatprep.mubr.f32.mxu0 0.0
    %2353 = vmatmul.mubr.f32.gmra.mxu0 %v2261
    %v2354 = vpop.f32.mrf.mxu0
    %v2355 = vadd.f32 %v2253, %v2354
    %v2356 = vpop.f32.mrf.mxu0
    %2357 = vmatprep.mubr.f32.mxu0 0.0
    %2358 = vmatmul.mubr.f32.gmra.mxu0 %v2264
    %v2359 = vpop.f32.mrf.mxu0
    %v2360 = vadd.f32 %v2253, %v2359
    %v2361 = vpop.f32.mrf.mxu0
    %2362 = vmatprep.mubr.f32.mxu0 0.0
    %2363 = vmatmul.mubr.f32.gmra.mxu0 %v2267
    %v2364 = vpop.f32.mrf.mxu0
    %v2365 = vadd.f32 %v2253, %v2364
    %v2366 = vpop.f32.mrf.mxu0
    %2367 = vmatprep.mubr.f32.mxu0 0.0
    %2368 = vmatmul.mubr.f32.gmra.mxu0 %v2270
    %v2369 = vpop.f32.mrf.mxu0
    %v2370 = vadd.f32 %v2253, %v2369
    %v2371 = vpop.f32.mrf.mxu0
    %2372 = vmatprep.mubr.f32.mxu0 0.0
    %2373 = vmatmul.mubr.f32.gmra.mxu0 %v2273
    %v2374 = vpop.f32.mrf.mxu0
    %v2375 = vadd.f32 %v2253, %v2374
    %v2376 = vpop.f32.mrf.mxu0
    %2377 = vmatprep.mubr.f32.mxu0 0.0
    %2378 = vmatmul.mubr.f32.gmra.mxu0 %v2276
    %v2379 = vpop.f32.mrf.mxu0
    %v2380 = vadd.f32 %v2253, %v2379
    %v2381 = vpop.f32.mrf.mxu0
    %2382 = vdwg.mxu0
    %v2383 = vmax.f32 %v2345, 0.0
    %v2384 = vmax.f32 %v2350, 0.0
    %v2385 = vmax.f32 %v2355, 0.0
    %v2386 = vmax.f32 %v2360, 0.0
    %v2387 = vmax.f32 %v2365, 0.0
    %v2388 = vmax.f32 %v2370, 0.0
    %v2389 = vmax.f32 %v2375, 0.0
    %v2390 = vmax.f32 %v2380, 0.0
    %2391 = vst [vmem:[#allocation5] sm:$0xff] %v2383
    %2392 = vst [vmem:[#allocation5 + $0x8] sm:$0xff] %v2384
    %2393 = vst [vmem:[#allocation5 + $0x10] sm:$0xff] %v2385
    %2394 = vst [vmem:[#allocation5 + $0x18] sm:$0xff] %v2386
    %2395 = vst [vmem:[#allocation5 + $0x20] sm:$0xff] %v2387
    %2396 = vst [vmem:[#allocation5 + $0x28] sm:$0xff] %v2388
    %2397 = vst [vmem:[#allocation5 + $0x30] sm:$0xff] %v2389
    %2398 = vst [vmem:[#allocation5 + $0x38] sm:$0xff] %v2390
    // Predicated region
    $region30: #{tpu_custom_call.1} parent=1 // pred_check
      _
    $region31: #{tpu_custom_call.1} parent=1 // pred_check_branch
      %2400 = sbr.rel (0) target = $region33
    $region32: #{tpu_custom_call.1} parent=1 // pred_region
      %s2402 = ssub.s32 1024, 1024
      %2403 = vsyncadd [#allocation4], %s2402
      %s2404 = sshll.u32 [#allocation5], 4
      %s2405 = int_to_ptr.vmem [resolvable:$true] %s2404
      %2410 = dma.vmem_to_hbm [thread:$0]  %s2405, 1024, %s6, [#allocation4], 128, 128, 8
    $region33: #{tpu_custom_call.1} parent=1 // pred_fallthru
      _
    // Predicated region
    $region34: #{tpu_custom_call.1} parent=1 // pred_check
      _
    $region35: #{tpu_custom_call.1} parent=1 // pred_check_branch
      %2412 = sbr.rel (0) target = $region37
    $region36: #{tpu_custom_call.1} parent=1 // pred_region
      %2413 = dma.done [#allocation4], 1024
    $region37: #{tpu_custom_call.1} parent=1 // pred_fallthru
      _
    %2414 = vsyncpa [#allocation3], 1
    %2415 = vsyncpa [#allocation4], 1

</llo_original>
